<compile_context>
chip_gen: v6e
topology: v6e:2x2x1
jax: 0.10.0
libtpu: 0.0.40
codegen_flags: <defaults>
</compile_context>

<pallas_src>
import math

import jax
import jax.numpy as jnp
from jax.experimental import pallas as pl
from jax.experimental.pallas import tpu as pltpu

IN_F = 80 * 8      # 640
T = 24             # rows of qkkv (q, k, 22 v-heads)
NV = T - 2         # 22 value heads
S = 80
D = 8
SCALE = 1.0 / math.sqrt(D)


# ----------------------------- kernels ------------------------------------ #

def linear_kernel(x_ref, wt_ref, b_ref, o_ref):
    # qkkv = x @ W^T + b.  W^T was materialized once at init (bf16), so this
    # is a plain jnp.dot with no in-kernel weight relayout.  f32 accumulation,
    # bf16 store.
    x = x_ref[...].astype(jnp.bfloat16)
    acc = jnp.dot(x, wt_ref[...], preferred_element_type=jnp.float32)
    o_ref[...] = (acc + b_ref[...]).astype(jnp.bfloat16)


def attn_kernel(m_ref, o_ref):
    # m = [q | k | v_0 ... v_21] merged along lanes: (80, 192) bf16.
    m = m_ref[...]
    q = m[:, 0:D]                                    # (80, 8) bf16
    k = m[:, D:2 * D].astype(jnp.float32)            # (80, 8) f32

    # f32 softmax over the 80 keys of k^T * scale.
    kt = jnp.transpose(k) * SCALE                    # (8, 80)
    mx = jnp.max(kt, axis=-1, keepdims=True)
    e = jnp.exp(kt - mx)
    a = e / jnp.sum(e, axis=-1, keepdims=True)       # (8, 80) f32

    # Associativity: (q @ a) @ heads == q @ (a @ heads).  Applying it to the
    # whole merged matrix keeps all operands lane-aligned; the two extra
    # columns (a@q, a@k) cost nothing and are dropped by the caller.
    b2 = jnp.dot(a.astype(jnp.bfloat16), m,
                 preferred_element_type=jnp.float32)              # (8, 192) f32
    o_ref[...] = jnp.dot(q, b2, preferred_element_type=jnp.float32)  # (80, 192)


# ----------------------------- wrappers ------------------------------------ #

_SINGLE_STEP = pltpu.CompilerParams(dimension_semantics=("arbitrary",))


def _linear(x2d, wt_bf16, b2d):
    return pl.pallas_call(
        linear_kernel,
        out_shape=jax.ShapeDtypeStruct((T, IN_F), jnp.bfloat16),
        grid=(1,),
        in_specs=[
            pl.BlockSpec((T, IN_F), lambda i: (0, 0)),
            pl.BlockSpec((IN_F, IN_F), lambda i: (0, 0)),
            pl.BlockSpec((1, IN_F), lambda i: (0, 0)),
        ],
        out_specs=pl.BlockSpec((T, IN_F), lambda i: (0, 0)),
        compiler_params=_SINGLE_STEP,
    )(x2d, wt_bf16, b2d)


def _attention(m):
    return pl.pallas_call(
        attn_kernel,
        out_shape=jax.ShapeDtypeStruct((S, T * D), jnp.float32),
        grid=(1,),
        in_specs=[pl.BlockSpec((S, T * D), lambda i: (0, 0))],
        out_specs=pl.BlockSpec((S, T * D), lambda i: (0, 0)),
        compiler_params=_SINGLE_STEP,
    )(m)


@jax.jit
def model_forward(x1, wt_bf16, b):
    # x2, x3, x4 of the PyTorch forward are unused there as well.
    x2d = x1.reshape(T, IN_F)
    qkkv = _linear(x2d, wt_bf16, b.reshape(1, IN_F))                 # (24,640) bf16

    # Single lane-dense merged attention input: m[s, t*8 + d] = qkkv[t, s, d].
    m = qkkv.reshape(T, S, D).transpose(1, 0, 2).reshape(S, T * D)   # (80,192) bf16

    out = _attention(m)                                              # (80,192) f32

    # Un-merge heads and drop the q/k columns (heads 0 and 1).
    return out.reshape(S, T, D).transpose(1, 0, 2)[2:][None]         # (1,22,80,8)


# --------------------------- pure-JAX reference ----------------------------- #

def ref_forward(w, b, x1):
    hi = jax.lax.Precision.HIGHEST
    qkkv = jnp.dot(x1.reshape(T, IN_F), w.T, precision=hi) + b
    qkkv = qkkv.reshape(1, T, S, D)
    q = qkkv[:, :1]
    k = qkkv[:, 1:2]
    v = qkkv[:, 2:]
    kt = jnp.swapaxes(k, -2, -1) * SCALE
    a = jax.nn.softmax(kt, axis=-1)
    qk = jnp.matmul(q, a, precision=hi)
    return jnp.matmul(qk, v, precision=hi)


# --------------------------------- main ------------------------------------ #

if __name__ == "__main__":
    key = jax.random.PRNGKey(0)
    k_x, k_w, k_b = jax.random.split(key, 3)

    # Deterministic "Linear(640, 640)" params (PyTorch-style uniform init).
    bound = 1.0 / math.sqrt(IN_F)
    w = jax.random.uniform(k_w, (IN_F, IN_F), jnp.float32, -bound, bound)
    b = jax.random.uniform(k_b, (IN_F,), jnp.float32, -bound, bound)

    # Input consistent with the forward: (1, 24, 640) so Linear(640,640) and
    # the reshape to (1, 24, 80, 8) both hold.
    x1 = jax.random.normal(k_x, (1, T, IN_F), jnp.float32)

    # One-time weight prep outside the per-call path: transpose + bf16.
    # (bf16 weights/intermediates are a deliberate precision trade; they stay
    # well inside the 1e-2 tolerance — keep w (f32) around as a fallback.)
    wt_bf16 = jnp.asarray(w.T, dtype=jnp.bfloat16)

    out = model_forward(x1, wt_bf16, b)
    out = jax.block_until_ready(out)

    ref = ref_forward(w, b, x1)
    assert out.shape == (1, NV, S, D), out.shape
    assert jnp.allclose(out, ref, rtol=1e-2, atol=1e-2), (
        float(jnp.max(jnp.abs(out - ref)))
    )
    print("KERNEL_OK")
</pallas_src>

<mosaic_0001>
module attributes {stable_mosaic.version = 11 : i64} {
  func.func @linear_kernel(%arg0: i32, %arg1: memref<24x640xf32, #tpu.memory_space<vmem>>, %arg2: memref<640x640xbf16, #tpu.memory_space<vmem>>, %arg3: memref<1x640xf32, #tpu.memory_space<vmem>>, %arg4: memref<24x640xbf16, #tpu.memory_space<vmem>>) attributes {dimension_semantics = [#tpu.dimension_semantics<arbitrary>], iteration_bounds = array<i64: 1>, scalar_prefetch = 0 : i64, scratch_operands = 0 : i64, tpu.core_type = #tpu.core_type<tc>, window_params = [{pipeline_mode = #tpu.pipeline_mode<synchronous>, transform_indices = @transform_0, window_bounds = array<i64: 24, 640>}, {pipeline_mode = #tpu.pipeline_mode<synchronous>, transform_indices = @transform_1, window_bounds = array<i64: 640, 640>}, {pipeline_mode = #tpu.pipeline_mode<synchronous>, transform_indices = @transform_2, window_bounds = array<i64: 1, 640>}, {pipeline_mode = #tpu.pipeline_mode<synchronous>, transform_indices = @transform_3, window_bounds = array<i64: 24, 640>}]} {
    %c0 = arith.constant 0 : index
    %c0_0 = arith.constant 0 : index
    %0 = vector.load %arg1[%c0, %c0_0] : memref<24x640xf32, #tpu.memory_space<vmem>>, vector<24x640xf32>
    %1 = arith.truncf %0 : vector<24x640xf32> to vector<24x640xbf16>
    %c0_1 = arith.constant 0 : index
    %c0_2 = arith.constant 0 : index
    %2 = vector.load %arg2[%c0_1, %c0_2] : memref<640x640xbf16, #tpu.memory_space<vmem>>, vector<640x640xbf16>
    %cst = arith.constant dense<0.000000e+00> : vector<24x640xf32>
    %3 = tpu.matmul %1, %2, %cst {dimension_numbers = #tpu.dot_dimension_numbers<[1], [0], [0], [1], [0, 0, 1, 1], [], []>} : vector<24x640xbf16>, vector<640x640xbf16>, vector<24x640xf32> -> vector<24x640xf32>
    %c0_3 = arith.constant 0 : index
    %c0_4 = arith.constant 0 : index
    %4 = vector.load %arg3[%c0_3, %c0_4] : memref<1x640xf32, #tpu.memory_space<vmem>>, vector<1x640xf32>
    %5 = vector.broadcast %4 : vector<1x640xf32> to vector<24x640xf32>
    %6 = arith.addf %3, %5 : vector<24x640xf32>
    %7 = arith.truncf %6 : vector<24x640xf32> to vector<24x640xbf16>
    %c0_5 = arith.constant 0 : index
    %c0_6 = arith.constant 0 : index
    %8 = vector.load %arg4[%c0_5, %c0_6] : memref<24x640xbf16, #tpu.memory_space<vmem>>, vector<24x640xbf16>
    tpu.vector_store %arg4[%c0_5, %c0_6], %7 {strides = array<i32>} : memref<24x640xbf16, #tpu.memory_space<vmem>>, vector<24x640xbf16>,
    return
  }
  func.func @transform_0(%arg0: i32) -> (i32, i32) {
    %c0_i32 = arith.constant 0 : i32
    %c0_i32_0 = arith.constant 0 : i32
    %c0_i32_1 = arith.constant 0 : i32
    return %c0_i32, %c0_i32_0 : i32, i32
  }
  func.func @transform_1(%arg0: i32) -> (i32, i32) {
    %c0_i32 = arith.constant 0 : i32
    %c0_i32_0 = arith.constant 0 : i32
    %c0_i32_1 = arith.constant 0 : i32
    return %c0_i32, %c0_i32_0 : i32, i32
  }
  func.func @transform_2(%arg0: i32) -> (i32, i32) {
    %c0_i32 = arith.constant 0 : i32
    %c0_i32_0 = arith.constant 0 : i32
    %c0_i32_1 = arith.constant 0 : i32
    return %c0_i32, %c0_i32_0 : i32, i32
  }
  func.func @transform_3(%arg0: i32) -> (i32, i32) {
    %c0_i32 = arith.constant 0 : i32
    %c0_i32_0 = arith.constant 0 : i32
    %c0_i32_1 = arith.constant 0 : i32
    return %c0_i32, %c0_i32_0 : i32, i32
  }
}

module attributes {stable_mosaic.version = 11 : i64} {
  func.func @attn_kernel(%arg0: i32, %arg1: memref<80x192xbf16, #tpu.memory_space<vmem>>, %arg2: memref<80x192xf32, #tpu.memory_space<vmem>>) attributes {dimension_semantics = [#tpu.dimension_semantics<arbitrary>], iteration_bounds = array<i64: 1>, scalar_prefetch = 0 : i64, scratch_operands = 0 : i64, tpu.core_type = #tpu.core_type<tc>, window_params = [{pipeline_mode = #tpu.pipeline_mode<synchronous>, transform_indices = @transform_0, window_bounds = array<i64: 80, 192>}, {pipeline_mode = #tpu.pipeline_mode<synchronous>, transform_indices = @transform_1, window_bounds = array<i64: 80, 192>}]} {
    %c0 = arith.constant 0 : index
    %c0_0 = arith.constant 0 : index
    %0 = vector.load %arg1[%c0, %c0_0] : memref<80x192xbf16, #tpu.memory_space<vmem>>, vector<80x192xbf16>
    %1 = vector.extract_strided_slice %0 {offsets = [0, 0], sizes = [80, 8], strides = [1, 1]} : vector<80x192xbf16> to vector<80x8xbf16>
    %2 = vector.extract_strided_slice %0 {offsets = [0, 8], sizes = [80, 8], strides = [1, 1]} : vector<80x192xbf16> to vector<80x8xbf16>
    %3 = arith.extf %2 : vector<80x8xbf16> to vector<80x8xf32>
    %4 = tpu.transpose %3, [1, 0] : vector<80x8xf32> -> vector<8x80xf32>
    %cst = arith.constant 0.353553385 : f32
    %5 = vector.broadcast %cst : f32 to vector<8x80xf32>
    %6 = arith.mulf %4, %5 : vector<8x80xf32>
    %cst_1 = arith.constant dense<0xFF800000> : vector<8xf32>
    %7 = vector.multi_reduction <maximumf>, %6, %cst_1 [1] : vector<8x80xf32> to vector<8xf32>
    %8 = vector.shape_cast %7 : vector<8xf32> to vector<8x1xf32>
    %9 = vector.broadcast %8 : vector<8x1xf32> to vector<8x80xf32>
    %10 = arith.subf %6, %9 : vector<8x80xf32>
    %11 = math.exp %10 : vector<8x80xf32>
    %cst_2 = arith.constant dense<0.000000e+00> : vector<8xf32>
    %12 = vector.multi_reduction <add>, %11, %cst_2 [1] : vector<8x80xf32> to vector<8xf32>
    %13 = vector.shape_cast %12 : vector<8xf32> to vector<8x1xf32>
    %14 = vector.broadcast %13 : vector<8x1xf32> to vector<8x80xf32>
    %15 = arith.divf %11, %14 : vector<8x80xf32>
    %16 = arith.truncf %15 : vector<8x80xf32> to vector<8x80xbf16>
    %cst_3 = arith.constant dense<0.000000e+00> : vector<8x192xf32>
    %17 = tpu.matmul %16, %0, %cst_3 {dimension_numbers = #tpu.dot_dimension_numbers<[1], [0], [0], [1], [0, 0, 1, 1], [], []>} : vector<8x80xbf16>, vector<80x192xbf16>, vector<8x192xf32> -> vector<8x192xf32>
    %cst_4 = arith.constant dense<0.000000e+00> : vector<80x192xf32>
    %18 = tpu.matmul %1, %17, %cst_4 {dimension_numbers = #tpu.dot_dimension_numbers<[1], [0], [0], [1], [0, 0, 1, 1], [], []>} : vector<80x8xbf16>, vector<8x192xf32>, vector<80x192xf32> -> vector<80x192xf32>
    %c0_5 = arith.constant 0 : index
    %c0_6 = arith.constant 0 : index
    %19 = vector.load %arg2[%c0_5, %c0_6] : memref<80x192xf32, #tpu.memory_space<vmem>>, vector<80x192xf32>
    tpu.vector_store %arg2[%c0_5, %c0_6], %18 {strides = array<i32>} : memref<80x192xf32, #tpu.memory_space<vmem>>, vector<80x192xf32>,
    return
  }
  func.func @transform_0(%arg0: i32) -> (i32, i32) {
    %c0_i32 = arith.constant 0 : i32
    %c0_i32_0 = arith.constant 0 : i32
    %c0_i32_1 = arith.constant 0 : i32
    return %c0_i32, %c0_i32_0 : i32, i32
  }
  func.func @transform_1(%arg0: i32) -> (i32, i32) {
    %c0_i32 = arith.constant 0 : i32
    %c0_i32_0 = arith.constant 0 : i32
    %c0_i32_1 = arith.constant 0 : i32
    return %c0_i32, %c0_i32_0 : i32, i32
  }
}

</mosaic_0001>

<llo_original>
// kernel: model_forward.3
$region0: #{model_forward.3}
  #allocation0 [shape = 'u32[]', space=smem, size = 0x4, offset = 0x4, fixed_abs, tag = 'smem constant byte address 0x4 - core index']
  #allocation1 [shape = 'u32[144,128]{1,0:T(1,128)}', space=vmem, size = 0x12000, scoped, tag = 'internal scratch']
  %s0 = inlined_call_operand.vmem [shape: bf16[80,192], index: 0, kind: input, shape index: {}]
  %s1 = inlined_call_operand.vmem [shape: f32[80,192], index: 1, kind: output, shape index: {}]
  %s2 = sld [smem:[#allocation0]]
  $region14: #{model_forward.3} parent=0
    _
  %s4 = ssub.s32 1, %s2
  %s5 = scalar_select 0, %s4, %s2
  // Predicated region
  $region2: #{model_forward.3} parent=0 // pred_check
    _
  $region3: #{model_forward.3} parent=0 // pred_check_branch
    %7 = sbr.rel (0) target = $region5
  $region4: #{model_forward.3} parent=0 // pred_region
    _
  $region5: #{model_forward.3} parent=0 // pred_fallthru
    _
  %v9 = vld [vmem:[%s0] sm:$0xff]
  %v10 = vld [vmem:[%s0 + $0x8] sm:$0xff]
  %v11 = vld [vmem:[%s0 + $0x10] sm:$0xff]
  %v12 = vld [vmem:[%s0 + $0x18] sm:$0xff]
  %v13 = vld [vmem:[%s0 + $0x20] sm:$0xff]
  %v14 = vld [vmem:[%s0 + $0x28] sm:$0xff]
  %v15 = vld [vmem:[%s0 + $0x30] sm:$0xff]
  %v16 = vld [vmem:[%s0 + $0x38] sm:$0xff]
  %v17 = vld [vmem:[%s0 + $0x40] sm:$0xff]
  %v18 = vld [vmem:[%s0 + $0x48] sm:$0xff]
  %v19 = vunpack.c.l.bf16 %v9
  %v20 = vunpack.c.l.bf16 %v10
  %v21 = vunpack.c.l.bf16 %v11
  %v22 = vunpack.c.l.bf16 %v12
  %v23 = vunpack.c.l.bf16 %v13
  %v24 = vunpack.c.l.bf16 %v14
  %v25 = vunpack.c.l.bf16 %v15
  %v26 = vunpack.c.l.bf16 %v16
  %v27 = vunpack.c.l.bf16 %v17
  %v28 = vunpack.c.l.bf16 %v18
  %39 = vrot.lane.b32.xlu0 %v19, 120
  %v40 = vpop.permute.xlu0 %39
  %41 = vrot.lane.b32.xlu0 %v20, 120
  %v42 = vpop.permute.xlu0 %41
  %43 = vrot.lane.b32.xlu0 %v21, 120
  %v44 = vpop.permute.xlu0 %43
  %45 = vrot.lane.b32.xlu0 %v22, 120
  %v46 = vpop.permute.xlu0 %45
  %47 = vrot.lane.b32.xlu0 %v23, 120
  %v48 = vpop.permute.xlu0 %47
  %49 = vrot.lane.b32.xlu0 %v24, 120
  %v50 = vpop.permute.xlu0 %49
  %51 = vrot.lane.b32.xlu0 %v25, 120
  %v52 = vpop.permute.xlu0 %51
  %53 = vrot.lane.b32.xlu0 %v26, 120
  %v54 = vpop.permute.xlu0 %53
  %55 = vrot.lane.b32.xlu0 %v27, 120
  %v56 = vpop.permute.xlu0 %55
  %57 = vrot.lane.b32.xlu0 %v28, 120
  %v58 = vpop.permute.xlu0 %57
  %69 = vxpose.xlu0.b32.start [1/16] %v40, 128
  %70 = vxpose.xlu0.b32.cont [2/16] %v42, 128
  %71 = vxpose.xlu0.b32.cont [3/16] %v44, 128
  %72 = vxpose.xlu0.b32.cont [4/16] %v46, 128
  %73 = vxpose.xlu0.b32.cont [5/16] %v48, 128
  %74 = vxpose.xlu0.b32.cont [6/16] %v50, 128
  %75 = vxpose.xlu0.b32.cont [7/16] %v52, 128
  %76 = vxpose.xlu0.b32.cont [8/16] %v54, 128
  %77 = vxpose.xlu0.b32.cont [9/16] %v56, 128
  %78 = vxpose.xlu0.b32.cont [10/16] %v58, 128
  %79 = vxpose.xlu0.b32.cont [11/16] 0.0, 128
  %80 = vxpose.xlu0.b32.cont [12/16] 0.0, 128
  %81 = vxpose.xlu0.b32.cont [13/16] 0.0, 128
  %82 = vxpose.xlu0.b32.cont [14/16] 0.0, 128
  %83 = vxpose.xlu0.b32.cont [15/16] 0.0, 128
  %84 = vxpose.xlu0.b32.end [16/16] 0.0, 128
  %v85 = vpop.trf.xlu0
  %v86 = vpop.trf.xlu0
  %v87 = vpop.trf.xlu0
  %v88 = vpop.trf.xlu0
  %v89 = vpop.trf.xlu0
  %v90 = vpop.trf.xlu0
  %v91 = vpop.trf.xlu0
  %v92 = vpop.trf.xlu0
  %v93 = vpop.trf.xlu0
  %v94 = vpop.trf.xlu0
  %v95 = vpop.trf.xlu0
  %v96 = vpop.trf.xlu0
  %v97 = vpop.trf.xlu0
  %v98 = vpop.trf.xlu0
  %v99 = vpop.trf.xlu0
  %v100 = vpop.trf.xlu0
  %v101 = vmul.f32 %v85, 0.35355338
  %vm102 = vcmask 654336
  %v103 = vsel %vm102, %v101, -inf
  %104 = vmax.xlane.f32.xlu0 %v103
  %v105 = vpop.xlane.xlu0 %104
  %v106 = vsub.f32 %v101, %v105
  %v107 = vmul.f32 %v106, 1.442695
  %v108 = vpow.pop %v107
  %v109 = vsel %vm102, %v108, 0.0
  %110 = vadd.xlane.f32.xlu0 %v109
  %v111 = vpop.xlane.xlu0 %110
  %v112 = vrcp.pop %v111
  %v113 = vmul.f32 %v108, %v112
  %v114 = vpack.c.bf16 %v113, %v113
  %v125 = vunpack.c.l.b16 %v9
  %v126 = vunpack.c.h.b16 %v9
  %v127 = vunpack.c.l.b16 %v10
  %v128 = vunpack.c.h.b16 %v10
  %v129 = vunpack.c.l.b16 %v11
  %v130 = vunpack.c.h.b16 %v11
  %v131 = vunpack.c.l.b16 %v12
  %v132 = vunpack.c.h.b16 %v12
  %v133 = vunpack.c.l.b16 %v13
  %v134 = vunpack.c.h.b16 %v13
  %v135 = vunpack.c.l.b16 %v14
  %v136 = vunpack.c.h.b16 %v14
  %v137 = vunpack.c.l.b16 %v15
  %v138 = vunpack.c.h.b16 %v15
  %v139 = vunpack.c.l.b16 %v16
  %v140 = vunpack.c.h.b16 %v16
  %v141 = vunpack.c.l.b16 %v17
  %v142 = vunpack.c.h.b16 %v17
  %v143 = vunpack.c.l.b16 %v18
  %v144 = vunpack.c.h.b16 %v18
  %v145 = vpack.c.b16 %v127, %v125
  %v146 = vpack.c.b16 %v128, %v126
  %v147 = vpack.c.b16 %v131, %v129
  %v148 = vpack.c.b16 %v132, %v130
  %v149 = vpack.c.b16 %v135, %v133
  %v150 = vpack.c.b16 %v136, %v134
  %v151 = vpack.c.b16 %v139, %v137
  %v152 = vpack.c.b16 %v140, %v138
  %v153 = vpack.c.b16 %v143, %v141
  %v154 = vpack.c.b16 %v144, %v142
  %v166 = vsel %vm102, %v114, 0
  %168 = vmatprep.subr.bf16.mxu0 0
  %169 = vmatpush1.bf16.msra.mxu0 0
  %170 = vmatprep.subr.bf16.mxu0 0
  %171 = vmatpush1.bf16.msra.mxu0 0
  %172 = vmatprep.subr.bf16.mxu0 0
  %173 = vmatpush1.bf16.msra.mxu0 0
  %174 = vmatprep.subr.bf16.mxu0 %v154
  %175 = vmatpush1.bf16.msra.mxu0 %v153
  %176 = vmatprep.subr.bf16.mxu0 %v152
  %177 = vmatpush1.bf16.msra.mxu0 %v151
  %178 = vmatprep.subr.bf16.mxu0 %v150
  %179 = vmatpush1.bf16.msra.mxu0 %v149
  %180 = vmatprep.subr.bf16.mxu0 %v148
  %181 = vmatpush1.bf16.msra.mxu0 %v147
  %182 = vmatprep.subr.bf16.mxu0 %v146
  %183 = vmatpush1.bf16.msra.mxu0 %v145
  %184 = vmatprep.subr.bf16.mxu0 0
  %185 = vmatpush2.bf16.msra.mxu0 0
  %186 = vmatprep.subr.bf16.mxu0 0
  %187 = vmatpush2.bf16.msra.mxu0 0
  %188 = vmatprep.subr.bf16.mxu0 0
  %189 = vmatpush2.bf16.msra.mxu0 0
  %190 = vmatprep.subr.bf16.mxu0 0
  %191 = vmatpush2.bf16.msra.mxu0 0
  %192 = vmatprep.subr.bf16.mxu0 0
  %193 = vmatpush2.bf16.msra.mxu0 0
  %194 = vmatprep.subr.bf16.mxu0 0
  %195 = vmatpush2.bf16.msra.mxu0 0
  %196 = vmatprep.subr.bf16.mxu0 0
  %197 = vmatpush2.bf16.msra.mxu0 0
  %198 = vmatprep.subr.bf16.mxu0 0
  %199 = vmatpush2.bf16.msra.mxu0 0
  %200 = vmatprep.mubr.bf16.mxu0 0
  %201 = vmatmul.mubr.bf16.gmra.mxu0 %v166
  %v202 = vpop.f32.mrf.mxu0
  %v203 = vadd.f32 0.0, %v202
  %v204 = vpop.f32.mrf.mxu0
  %v205 = vadd.f32 0.0, %v204
  %v206 = vpop.f32.mrf.mxu0
  %v207 = vpop.f32.mrf.mxu0
  %208 = vdwg.mxu0
  %vm209 = vcmask 64512
  %v211 = vsel %vm209, %v145, 0
  %v214 = vsel %vm209, %v147, 0
  %v217 = vsel %vm209, %v149, 0
  %v220 = vsel %vm209, %v151, 0
  %v223 = vsel %vm209, %v153, 0
  %225 = vmatprep.subr.mxu0 0.0
  %226 = vmatpush1.msra.mxu0 0.0
  %227 = vmatprep.subr.mxu0 0.0
  %228 = vmatpush1.msra.mxu0 0.0
  %229 = vmatprep.subr.mxu0 0.0
  %230 = vmatpush1.msra.mxu0 0.0
  %231 = vmatprep.subr.mxu0 0.0
  %232 = vmatpush1.msra.mxu0 0.0
  %233 = vmatprep.subr.mxu0 0.0
  %234 = vmatpush1.msra.mxu0 0.0
  %235 = vmatprep.subr.mxu0 0.0
  %236 = vmatpush1.msra.mxu0 0.0
  %237 = vmatprep.subr.mxu0 0.0
  %238 = vmatpush1.msra.mxu0 0.0
  %239 = vmatprep.subr.mxu0 0.0
  %240 = vmatpush1.msra.mxu0 0.0
  %241 = vmatprep.subr.mxu0 0.0
  %242 = vmatpush1.msra.mxu0 0.0
  %243 = vmatprep.subr.mxu0 0.0
  %244 = vmatpush1.msra.mxu0 0.0
  %245 = vmatprep.subr.mxu0 0.0
  %246 = vmatpush1.msra.mxu0 0.0
  %247 = vmatprep.subr.mxu0 0.0
  %248 = vmatpush1.msra.mxu0 0.0
  %249 = vmatprep.subr.mxu0 0.0
  %250 = vmatpush1.msra.mxu0 0.0
  %251 = vmatprep.subr.mxu0 0.0
  %252 = vmatpush1.msra.mxu0 0.0
  %253 = vmatprep.subr.mxu0 0.0
  %254 = vmatpush1.msra.mxu0 0.0
  %255 = vmatprep.subr.mxu0 %v205
  %256 = vmatpush1.msra.mxu0 %v203
  %257 = vmatprep.subr.mxu0 0.0
  %258 = vmatpush2.msra.mxu0 0.0
  %259 = vmatprep.subr.mxu0 0.0
  %260 = vmatpush2.msra.mxu0 0.0
  %261 = vmatprep.subr.mxu0 0.0
  %262 = vmatpush2.msra.mxu0 0.0
  %263 = vmatprep.subr.mxu0 0.0
  %264 = vmatpush2.msra.mxu0 0.0
  %265 = vmatprep.subr.mxu0 0.0
  %266 = vmatpush2.msra.mxu0 0.0
  %267 = vmatprep.subr.mxu0 0.0
  %268 = vmatpush2.msra.mxu0 0.0
  %269 = vmatprep.subr.mxu0 0.0
  %270 = vmatpush2.msra.mxu0 0.0
  %271 = vmatprep.subr.mxu0 0.0
  %272 = vmatpush2.msra.mxu0 0.0
  %273 = vmatprep.subr.mxu0 0.0
  %274 = vmatpush2.msra.mxu0 0.0
  %275 = vmatprep.subr.mxu0 0.0
  %276 = vmatpush2.msra.mxu0 0.0
  %277 = vmatprep.subr.mxu0 0.0
  %278 = vmatpush2.msra.mxu0 0.0
  %279 = vmatprep.subr.mxu0 0.0
  %280 = vmatpush2.msra.mxu0 0.0
  %281 = vmatprep.subr.mxu0 0.0
  %282 = vmatpush2.msra.mxu0 0.0
  %283 = vmatprep.subr.mxu0 0.0
  %284 = vmatpush2.msra.mxu0 0.0
  %285 = vmatprep.subr.mxu0 0.0
  %286 = vmatpush2.msra.mxu0 0.0
  %287 = vmatprep.subr.mxu0 0.0
  %288 = vmatpush2.msra.mxu0 0.0
  %289 = vmatprep.mubr.bf16.mxu0 0
  %290 = vmatmul.mubr.bf16.gmra.mxu0 %v211
  %v291 = vpop.f32.mrf.mxu0
  %v292 = vadd.f32 0.0, %v291
  %v293 = vpop.f32.mrf.mxu0
  %v294 = vadd.f32 0.0, %v293
  %v295 = vpop.f32.mrf.mxu0
  %v296 = vadd.f32 0.0, %v295
  %v297 = vpop.f32.mrf.mxu0
  %v298 = vadd.f32 0.0, %v297
  %299 = vmatprep.mubr.bf16.mxu0 0
  %300 = vmatmul.mubr.bf16.gmra.mxu0 %v214
  %v301 = vpop.f32.mrf.mxu0
  %v302 = vadd.f32 0.0, %v301
  %v303 = vpop.f32.mrf.mxu0
  %v304 = vadd.f32 0.0, %v303
  %v305 = vpop.f32.mrf.mxu0
  %v306 = vadd.f32 0.0, %v305
  %v307 = vpop.f32.mrf.mxu0
  %v308 = vadd.f32 0.0, %v307
  %309 = vmatprep.mubr.bf16.mxu0 0
  %310 = vmatmul.mubr.bf16.gmra.mxu0 %v217
  %v311 = vpop.f32.mrf.mxu0
  %v312 = vadd.f32 0.0, %v311
  %v313 = vpop.f32.mrf.mxu0
  %v314 = vadd.f32 0.0, %v313
  %v315 = vpop.f32.mrf.mxu0
  %v316 = vadd.f32 0.0, %v315
  %v317 = vpop.f32.mrf.mxu0
  %v318 = vadd.f32 0.0, %v317
  %319 = vmatprep.mubr.bf16.mxu0 0
  %320 = vmatmul.mubr.bf16.gmra.mxu0 %v220
  %v321 = vpop.f32.mrf.mxu0
  %v322 = vadd.f32 0.0, %v321
  %v323 = vpop.f32.mrf.mxu0
  %v324 = vadd.f32 0.0, %v323
  %v325 = vpop.f32.mrf.mxu0
  %v326 = vadd.f32 0.0, %v325
  %v327 = vpop.f32.mrf.mxu0
  %v328 = vadd.f32 0.0, %v327
  %329 = vmatprep.mubr.bf16.mxu0 0
  %330 = vmatmul.mubr.bf16.gmra.mxu0 %v223
  %v331 = vpop.f32.mrf.mxu0
  %v332 = vadd.f32 0.0, %v331
  %v333 = vpop.f32.mrf.mxu0
  %v334 = vadd.f32 0.0, %v333
  %v335 = vpop.f32.mrf.mxu0
  %v336 = vadd.f32 0.0, %v335
  %v337 = vpop.f32.mrf.mxu0
  %v338 = vadd.f32 0.0, %v337
  %339 = vdwg.mxu0
  %340 = vst [vmem:[%s1] sm:$0xff] %v292
  %vm341 = vcmask 523264
  %342 = vst.msk [vmem:[%s1 + $0x8] sm:$0xff] %vm341, %v294
  %343 = vst [vmem:[%s1 + $0x10] sm:$0xff] %v296
  %344 = vst.msk [vmem:[%s1 + $0x18] sm:$0xff] %vm341, %v298
  %345 = vst [vmem:[%s1 + $0x20] sm:$0xff] %v302
  %346 = vst.msk [vmem:[%s1 + $0x28] sm:$0xff] %vm341, %v304
  %347 = vst [vmem:[%s1 + $0x30] sm:$0xff] %v306
  %348 = vst.msk [vmem:[%s1 + $0x38] sm:$0xff] %vm341, %v308
  %349 = vst [vmem:[%s1 + $0x40] sm:$0xff] %v312
  %350 = vst.msk [vmem:[%s1 + $0x48] sm:$0xff] %vm341, %v314
  %351 = vst [vmem:[%s1 + $0x50] sm:$0xff] %v316
  %352 = vst.msk [vmem:[%s1 + $0x58] sm:$0xff] %vm341, %v318
  %353 = vst [vmem:[%s1 + $0x60] sm:$0xff] %v322
  %354 = vst.msk [vmem:[%s1 + $0x68] sm:$0xff] %vm341, %v324
  %355 = vst [vmem:[%s1 + $0x70] sm:$0xff] %v326
  %356 = vst.msk [vmem:[%s1 + $0x78] sm:$0xff] %vm341, %v328
  %357 = vst [vmem:[%s1 + $0x80] sm:$0xff] %v332
  %358 = vst.msk [vmem:[%s1 + $0x88] sm:$0xff] %vm341, %v334
  %359 = vst [vmem:[%s1 + $0x90] sm:$0xff] %v336
  %360 = vst.msk [vmem:[%s1 + $0x98] sm:$0xff] %vm341, %v338
  // Predicated region
  $region6: #{model_forward.3} parent=0 // pred_check
    _
  $region7: #{model_forward.3} parent=0 // pred_check_branch
    %362 = sbr.rel (0) target = $region9
  $region8: #{model_forward.3} parent=0 // pred_region
    _
  $region9: #{model_forward.3} parent=0 // pred_fallthru
    _
  // Predicated region
  $region10: #{model_forward.3} parent=0 // pred_check
    _
  $region11: #{model_forward.3} parent=0 // pred_check_branch
    %364 = sbr.rel (0) target = $region13
  $region12: #{model_forward.3} parent=0 // pred_region
    _
  $region13: #{model_forward.3} parent=0 // pred_fallthru
    _

// kernel: model_forward.2
$region0: #{model_forward.2}
  #allocation0 [shape = 'u32[]', space=smem, size = 0x4, offset = 0x4, fixed_abs, tag = 'smem constant byte address 0x4 - core index']
  #allocation1 [shape = 'u32[144,128]{1,0:T(1,128)}', space=vmem, size = 0x12000, scoped, tag = 'internal scratch']
  %s0 = inlined_call_operand.hbm [shape: f32[24,640], index: 0, kind: input, shape index: {}]
  %s1 = inlined_call_operand.hbm [shape: bf16[640,640], index: 1, kind: input, shape index: {}]
  %s2 = inlined_call_operand.vmem [shape: f32[1,640], index: 2, kind: input, shape index: {}]
  %s3 = inlined_call_operand.vmem [shape: bf16[24,640], index: 3, kind: output, shape index: {}]
  %s4 = sld [smem:[#allocation0]]
  $region30: #{model_forward.2} parent=0
    _
  %s6 = ssub.s32 1, %s4
  %s7 = scalar_select 0, %s6, %s4
  $region1: #{model_forward.2} parent=0
    #allocation2 [shape = 'u8[61440]{0}', space=vmem, size = 0xf000, scoped, tag = 'input window, operand 0, single buffered']
    #allocation3 [shape = 's32[1]{0}', space=sflag, size = 0x4, scoped, tag = 'scoped memory for model_forward.2']
    #allocation4 [shape = 'u8[819200]{0}', space=vmem, size = 0xc8000, scoped, tag = 'input window, operand 1, single buffered']
    #allocation5 [shape = 's32[1]{0}', space=sflag, size = 0x4, scoped, tag = 'scoped memory for model_forward.2']
    %8 = vsyncpa [#allocation3], 0
    %9 = vsyncpa [#allocation5], 0
    // Predicated region
    $region2: #{model_forward.2} parent=1 // pred_check
      _
    $region3: #{model_forward.2} parent=1 // pred_check_branch
      %11 = sbr.rel (0) target = $region5
    $region4: #{model_forward.2} parent=1 // pred_region
      %s13 = ssub.s32 1920, 1920
      %14 = vsyncadd [#allocation3], %s13
      %s15 = sshll.u32 [#allocation2], 4
      %s16 = int_to_ptr.vmem [resolvable:$true] %s15
      %21 = dma.hbm_to_vmem [thread:$0]  %s0, 1920, %s16, [#allocation3], 640, 640, 40
    $region5: #{model_forward.2} parent=1 // pred_fallthru
      _
    // Predicated region
    $region6: #{model_forward.2} parent=1 // pred_check
      _
    $region7: #{model_forward.2} parent=1 // pred_check_branch
      %23 = sbr.rel (0) target = $region9
    $region8: #{model_forward.2} parent=1 // pred_region
      %s25 = ssub.s32 25600, 25600
      %26 = vsyncadd [#allocation5], %s25
      %s27 = sshll.u32 [#allocation4], 4
      %s28 = int_to_ptr.vmem [resolvable:$true] %s27
      %33 = dma.hbm_to_vmem [thread:$0]  %s1, 25600, %s28, [#allocation5], 320, 320, 20
    $region9: #{model_forward.2} parent=1 // pred_fallthru
      _
    // Predicated region
    $region10: #{model_forward.2} parent=1 // pred_check
      _
    $region11: #{model_forward.2} parent=1 // pred_check_branch
      %35 = sbr.rel (0) target = $region13
    $region12: #{model_forward.2} parent=1 // pred_region
      _
    $region13: #{model_forward.2} parent=1 // pred_fallthru
      _
    // Predicated region
    $region14: #{model_forward.2} parent=1 // pred_check
      _
    $region15: #{model_forward.2} parent=1 // pred_check_branch
      %37 = sbr.rel (0) target = $region17
    $region16: #{model_forward.2} parent=1 // pred_region
      %38 = dma.done [#allocation3], 1920
    $region17: #{model_forward.2} parent=1 // pred_fallthru
      _
    // Predicated region
    $region18: #{model_forward.2} parent=1 // pred_check
      _
    $region19: #{model_forward.2} parent=1 // pred_check_branch
      %40 = sbr.rel (0) target = $region21
    $region20: #{model_forward.2} parent=1 // pred_region
      %41 = dma.done [#allocation5], 25600
    $region21: #{model_forward.2} parent=1 // pred_fallthru
      _
    %v43 = vld [vmem:[#allocation2] sm:$0xff]
    %v44 = vld [vmem:[#allocation2 + $0x8] sm:$0xff]
    %v45 = vld [vmem:[#allocation2 + $0x10] sm:$0xff]
    %v46 = vld [vmem:[#allocation2 + $0x18] sm:$0xff]
    %v47 = vld [vmem:[#allocation2 + $0x20] sm:$0xff]
    %v48 = vld [vmem:[#allocation2 + $0x28] sm:$0xff]
    %v49 = vld [vmem:[#allocation2 + $0x30] sm:$0xff]
    %v50 = vld [vmem:[#allocation2 + $0x38] sm:$0xff]
    %v51 = vld [vmem:[#allocation2 + $0x40] sm:$0xff]
    %v52 = vld [vmem:[#allocation2 + $0x48] sm:$0xff]
    %v53 = vld [vmem:[#allocation2 + $0x50] sm:$0xff]
    %v54 = vld [vmem:[#allocation2 + $0x58] sm:$0xff]
    %v55 = vld [vmem:[#allocation2 + $0x60] sm:$0xff]
    %v56 = vld [vmem:[#allocation2 + $0x68] sm:$0xff]
    %v57 = vld [vmem:[#allocation2 + $0x70] sm:$0xff]
    %v58 = vpack.c.bf16 %v48, %v43
    %v59 = vpack.c.bf16 %v49, %v44
    %v60 = vpack.c.bf16 %v50, %v45
    %v61 = vpack.c.bf16 %v51, %v46
    %v62 = vpack.c.bf16 %v52, %v47
    %v63 = vpack.c.bf16 %v53, %v53
    %v64 = vpack.c.bf16 %v54, %v54
    %v65 = vpack.c.bf16 %v55, %v55
    %v66 = vpack.c.bf16 %v56, %v56
    %v67 = vpack.c.bf16 %v57, %v57
    %v68 = vld [vmem:[#allocation4] sm:$0xff]
    %v69 = vld [vmem:[#allocation4 + $0x8] sm:$0xff]
    %v70 = vld [vmem:[#allocation4 + $0x10] sm:$0xf]
    %v71 = vld [vmem:[#allocation4 + $0x14] sm:$0xff]
    %v72 = vld [vmem:[#allocation4 + $0x1c] sm:$0xff]
    %v73 = vld [vmem:[#allocation4 + $0x24] sm:$0xf]
    %v74 = vld [vmem:[#allocation4 + $0x28] sm:$0xff]
    %v75 = vld [vmem:[#allocation4 + $0x30] sm:$0xff]
    %v76 = vld [vmem:[#allocation4 + $0x38] sm:$0xf]
    %v77 = vld [vmem:[#allocation4 + $0x3c] sm:$0xff]
    %v78 = vld [vmem:[#allocation4 + $0x44] sm:$0xff]
    %v79 = vld [vmem:[#allocation4 + $0x4c] sm:$0xf]
    %v80 = vld [vmem:[#allocation4 + $0x50] sm:$0xff]
    %v81 = vld [vmem:[#allocation4 + $0x58] sm:$0xff]
    %v82 = vld [vmem:[#allocation4 + $0x60] sm:$0xf]
    %v83 = vld [vmem:[#allocation4 + $0x64] sm:$0xff]
    %v84 = vld [vmem:[#allocation4 + $0x6c] sm:$0xff]
    %v85 = vld [vmem:[#allocation4 + $0x74] sm:$0xf]
    %v86 = vld [vmem:[#allocation4 + $0x78] sm:$0xff]
    %v87 = vld [vmem:[#allocation4 + $0x80] sm:$0xff]
    %v88 = vld [vmem:[#allocation4 + $0x88] sm:$0xf]
    %v89 = vld [vmem:[#allocation4 + $0x8c] sm:$0xff]
    %v90 = vld [vmem:[#allocation4 + $0x94] sm:$0xff]
    %v91 = vld [vmem:[#allocation4 + $0x9c] sm:$0xf]
    %v92 = vld [vmem:[#allocation4 + $0xa0] sm:$0xff]
    %v93 = vld [vmem:[#allocation4 + $0xa8] sm:$0xff]
    %v94 = vld [vmem:[#allocation4 + $0xb0] sm:$0xf]
    %v95 = vld [vmem:[#allocation4 + $0xb4] sm:$0xff]
    %v96 = vld [vmem:[#allocation4 + $0xbc] sm:$0xff]
    %v97 = vld [vmem:[#allocation4 + $0xc4] sm:$0xf]
    %v98 = vld [vmem:[#allocation4 + $0xc8] sm:$0xff]
    %v99 = vld [vmem:[#allocation4 + $0xd0] sm:$0xff]
    %v100 = vld [vmem:[#allocation4 + $0xd8] sm:$0xf]
    %v101 = vld [vmem:[#allocation4 + $0xdc] sm:$0xff]
    %v102 = vld [vmem:[#allocation4 + $0xe4] sm:$0xff]
    %v103 = vld [vmem:[#allocation4 + $0xec] sm:$0xf]
    %v104 = vld [vmem:[#allocation4 + $0xf0] sm:$0xff]
    %v105 = vld [vmem:[#allocation4 + $0xf8] sm:$0xff]
    %v106 = vld [vmem:[#allocation4 + $0x100] sm:$0xf]
    %v107 = vld [vmem:[#allocation4 + $0x104] sm:$0xff]
    %v108 = vld [vmem:[#allocation4 + $0x10c] sm:$0xff]
    %v109 = vld [vmem:[#allocation4 + $0x114] sm:$0xf]
    %v110 = vld [vmem:[#allocation4 + $0x118] sm:$0xff]
    %v111 = vld [vmem:[#allocation4 + $0x120] sm:$0xff]
    %v112 = vld [vmem:[#allocation4 + $0x128] sm:$0xf]
    %v113 = vld [vmem:[#allocation4 + $0x12c] sm:$0xff]
    %v114 = vld [vmem:[#allocation4 + $0x134] sm:$0xff]
    %v115 = vld [vmem:[#allocation4 + $0x13c] sm:$0xf]
    %v116 = vld [vmem:[#allocation4 + $0x140] sm:$0xff]
    %v117 = vld [vmem:[#allocation4 + $0x148] sm:$0xff]
    %v118 = vld [vmem:[#allocation4 + $0x150] sm:$0xf]
    %v119 = vld [vmem:[#allocation4 + $0x154] sm:$0xff]
    %v120 = vld [vmem:[#allocation4 + $0x15c] sm:$0xff]
    %v121 = vld [vmem:[#allocation4 + $0x164] sm:$0xf]
    %v122 = vld [vmem:[#allocation4 + $0x168] sm:$0xff]
    %v123 = vld [vmem:[#allocation4 + $0x170] sm:$0xff]
    %v124 = vld [vmem:[#allocation4 + $0x178] sm:$0xf]
    %v125 = vld [vmem:[#allocation4 + $0x17c] sm:$0xff]
    %v126 = vld [vmem:[#allocation4 + $0x184] sm:$0xff]
    %v127 = vld [vmem:[#allocation4 + $0x18c] sm:$0xf]
    %v128 = vld [vmem:[#allocation4 + $0x190] sm:$0xff]
    %v129 = vld [vmem:[#allocation4 + $0x198] sm:$0xff]
    %v130 = vld [vmem:[#allocation4 + $0x1a0] sm:$0xf]
    %v131 = vld [vmem:[#allocation4 + $0x1a4] sm:$0xff]
    %v132 = vld [vmem:[#allocation4 + $0x1ac] sm:$0xff]
    %v133 = vld [vmem:[#allocation4 + $0x1b4] sm:$0xf]
    %v134 = vld [vmem:[#allocation4 + $0x1b8] sm:$0xff]
    %v135 = vld [vmem:[#allocation4 + $0x1c0] sm:$0xff]
    %v136 = vld [vmem:[#allocation4 + $0x1c8] sm:$0xf]
    %v137 = vld [vmem:[#allocation4 + $0x1cc] sm:$0xff]
    %v138 = vld [vmem:[#allocation4 + $0x1d4] sm:$0xff]
    %v139 = vld [vmem:[#allocation4 + $0x1dc] sm:$0xf]
    %v140 = vld [vmem:[#allocation4 + $0x1e0] sm:$0xff]
    %v141 = vld [vmem:[#allocation4 + $0x1e8] sm:$0xff]
    %v142 = vld [vmem:[#allocation4 + $0x1f0] sm:$0xf]
    %v143 = vld [vmem:[#allocation4 + $0x1f4] sm:$0xff]
    %v144 = vld [vmem:[#allocation4 + $0x1fc] sm:$0xff]
    %v145 = vld [vmem:[#allocation4 + $0x204] sm:$0xf]
    %v146 = vld [vmem:[#allocation4 + $0x208] sm:$0xff]
    %v147 = vld [vmem:[#allocation4 + $0x210] sm:$0xff]
    %v148 = vld [vmem:[#allocation4 + $0x218] sm:$0xf]
    %v149 = vld [vmem:[#allocation4 + $0x21c] sm:$0xff]
    %v150 = vld [vmem:[#allocation4 + $0x224] sm:$0xff]
    %v151 = vld [vmem:[#allocation4 + $0x22c] sm:$0xf]
    %v152 = vld [vmem:[#allocation4 + $0x230] sm:$0xff]
    %v153 = vld [vmem:[#allocation4 + $0x238] sm:$0xff]
    %v154 = vld [vmem:[#allocation4 + $0x240] sm:$0xf]
    %v155 = vld [vmem:[#allocation4 + $0x244] sm:$0xff]
    %v156 = vld [vmem:[#allocation4 + $0x24c] sm:$0xff]
    %v157 = vld [vmem:[#allocation4 + $0x254] sm:$0xf]
    %v158 = vld [vmem:[#allocation4 + $0x258] sm:$0xff]
    %v159 = vld [vmem:[#allocation4 + $0x260] sm:$0xff]
    %v160 = vld [vmem:[#allocation4 + $0x268] sm:$0xf]
    %v161 = vld [vmem:[#allocation4 + $0x26c] sm:$0xff]
    %v162 = vld [vmem:[#allocation4 + $0x274] sm:$0xff]
    %v163 = vld [vmem:[#allocation4 + $0x27c] sm:$0xf]
    %v164 = vld [vmem:[#allocation4 + $0x280] sm:$0xff]
    %v165 = vld [vmem:[#allocation4 + $0x288] sm:$0xff]
    %v166 = vld [vmem:[#allocation4 + $0x290] sm:$0xf]
    %v167 = vld [vmem:[#allocation4 + $0x294] sm:$0xff]
    %v168 = vld [vmem:[#allocation4 + $0x29c] sm:$0xff]
    %v169 = vld [vmem:[#allocation4 + $0x2a4] sm:$0xf]
    %v170 = vld [vmem:[#allocation4 + $0x2a8] sm:$0xff]
    %v171 = vld [vmem:[#allocation4 + $0x2b0] sm:$0xff]
    %v172 = vld [vmem:[#allocation4 + $0x2b8] sm:$0xf]
    %v173 = vld [vmem:[#allocation4 + $0x2bc] sm:$0xff]
    %v174 = vld [vmem:[#allocation4 + $0x2c4] sm:$0xff]
    %v175 = vld [vmem:[#allocation4 + $0x2cc] sm:$0xf]
    %v176 = vld [vmem:[#allocation4 + $0x2d0] sm:$0xff]
    %v177 = vld [vmem:[#allocation4 + $0x2d8] sm:$0xff]
    %v178 = vld [vmem:[#allocation4 + $0x2e0] sm:$0xf]
    %v179 = vld [vmem:[#allocation4 + $0x2e4] sm:$0xff]
    %v180 = vld [vmem:[#allocation4 + $0x2ec] sm:$0xff]
    %v181 = vld [vmem:[#allocation4 + $0x2f4] sm:$0xf]
    %v182 = vld [vmem:[#allocation4 + $0x2f8] sm:$0xff]
    %v183 = vld [vmem:[#allocation4 + $0x300] sm:$0xff]
    %v184 = vld [vmem:[#allocation4 + $0x308] sm:$0xf]
    %v185 = vld [vmem:[#allocation4 + $0x30c] sm:$0xff]
    %v186 = vld [vmem:[#allocation4 + $0x314] sm:$0xff]
    %v187 = vld [vmem:[#allocation4 + $0x31c] sm:$0xf]
    %v188 = vld [vmem:[#allocation4 + $0x320] sm:$0xff]
    %v189 = vld [vmem:[#allocation4 + $0x328] sm:$0xff]
    %v190 = vld [vmem:[#allocation4 + $0x330] sm:$0xf]
    %v191 = vld [vmem:[#allocation4 + $0x334] sm:$0xff]
    %v192 = vld [vmem:[#allocation4 + $0x33c] sm:$0xff]
    %v193 = vld [vmem:[#allocation4 + $0x344] sm:$0xf]
    %v194 = vld [vmem:[#allocation4 + $0x348] sm:$0xff]
    %v195 = vld [vmem:[#allocation4 + $0x350] sm:$0xff]
    %v196 = vld [vmem:[#allocation4 + $0x358] sm:$0xf]
    %v197 = vld [vmem:[#allocation4 + $0x35c] sm:$0xff]
    %v198 = vld [vmem:[#allocation4 + $0x364] sm:$0xff]
    %v199 = vld [vmem:[#allocation4 + $0x36c] sm:$0xf]
    %v200 = vld [vmem:[#allocation4 + $0x370] sm:$0xff]
    %v201 = vld [vmem:[#allocation4 + $0x378] sm:$0xff]
    %v202 = vld [vmem:[#allocation4 + $0x380] sm:$0xf]
    %v203 = vld [vmem:[#allocation4 + $0x384] sm:$0xff]
    %v204 = vld [vmem:[#allocation4 + $0x38c] sm:$0xff]
    %v205 = vld [vmem:[#allocation4 + $0x394] sm:$0xf]
    %v206 = vld [vmem:[#allocation4 + $0x398] sm:$0xff]
    %v207 = vld [vmem:[#allocation4 + $0x3a0] sm:$0xff]
    %v208 = vld [vmem:[#allocation4 + $0x3a8] sm:$0xf]
    %v209 = vld [vmem:[#allocation4 + $0x3ac] sm:$0xff]
    %v210 = vld [vmem:[#allocation4 + $0x3b4] sm:$0xff]
    %v211 = vld [vmem:[#allocation4 + $0x3bc] sm:$0xf]
    %v212 = vld [vmem:[#allocation4 + $0x3c0] sm:$0xff]
    %v213 = vld [vmem:[#allocation4 + $0x3c8] sm:$0xff]
    %v214 = vld [vmem:[#allocation4 + $0x3d0] sm:$0xf]
    %v215 = vld [vmem:[#allocation4 + $0x3d4] sm:$0xff]
    %v216 = vld [vmem:[#allocation4 + $0x3dc] sm:$0xff]
    %v217 = vld [vmem:[#allocation4 + $0x3e4] sm:$0xf]
    %v218 = vld [vmem:[#allocation4 + $0x3e8] sm:$0xff]
    %v219 = vld [vmem:[#allocation4 + $0x3f0] sm:$0xff]
    %v220 = vld [vmem:[#allocation4 + $0x3f8] sm:$0xf]
    %v221 = vld [vmem:[#allocation4 + $0x3fc] sm:$0xff]
    %v222 = vld [vmem:[#allocation4 + $0x404] sm:$0xff]
    %v223 = vld [vmem:[#allocation4 + $0x40c] sm:$0xf]
    %v224 = vld [vmem:[#allocation4 + $0x410] sm:$0xff]
    %v225 = vld [vmem:[#allocation4 + $0x418] sm:$0xff]
    %v226 = vld [vmem:[#allocation4 + $0x420] sm:$0xf]
    %v227 = vld [vmem:[#allocation4 + $0x424] sm:$0xff]
    %v228 = vld [vmem:[#allocation4 + $0x42c] sm:$0xff]
    %v229 = vld [vmem:[#allocation4 + $0x434] sm:$0xf]
    %v230 = vld [vmem:[#allocation4 + $0x438] sm:$0xff]
    %v231 = vld [vmem:[#allocation4 + $0x440] sm:$0xff]
    %v232 = vld [vmem:[#allocation4 + $0x448] sm:$0xf]
    %v233 = vld [vmem:[#allocation4 + $0x44c] sm:$0xff]
    %v234 = vld [vmem:[#allocation4 + $0x454] sm:$0xff]
    %v235 = vld [vmem:[#allocation4 + $0x45c] sm:$0xf]
    %v236 = vld [vmem:[#allocation4 + $0x460] sm:$0xff]
    %v237 = vld [vmem:[#allocation4 + $0x468] sm:$0xff]
    %v238 = vld [vmem:[#allocation4 + $0x470] sm:$0xf]
    %v239 = vld [vmem:[#allocation4 + $0x474] sm:$0xff]
    %v240 = vld [vmem:[#allocation4 + $0x47c] sm:$0xff]
    %v241 = vld [vmem:[#allocation4 + $0x484] sm:$0xf]
    %v242 = vld [vmem:[#allocation4 + $0x488] sm:$0xff]
    %v243 = vld [vmem:[#allocation4 + $0x490] sm:$0xff]
    %v244 = vld [vmem:[#allocation4 + $0x498] sm:$0xf]
    %v245 = vld [vmem:[#allocation4 + $0x49c] sm:$0xff]
    %v246 = vld [vmem:[#allocation4 + $0x4a4] sm:$0xff]
    %v247 = vld [vmem:[#allocation4 + $0x4ac] sm:$0xf]
    %v248 = vld [vmem:[#allocation4 + $0x4b0] sm:$0xff]
    %v249 = vld [vmem:[#allocation4 + $0x4b8] sm:$0xff]
    %v250 = vld [vmem:[#allocation4 + $0x4c0] sm:$0xf]
    %v251 = vld [vmem:[#allocation4 + $0x4c4] sm:$0xff]
    %v252 = vld [vmem:[#allocation4 + $0x4cc] sm:$0xff]
    %v253 = vld [vmem:[#allocation4 + $0x4d4] sm:$0xf]
    %v254 = vld [vmem:[#allocation4 + $0x4d8] sm:$0xff]
    %v255 = vld [vmem:[#allocation4 + $0x4e0] sm:$0xff]
    %v256 = vld [vmem:[#allocation4 + $0x4e8] sm:$0xf]
    %v257 = vld [vmem:[#allocation4 + $0x4ec] sm:$0xff]
    %v258 = vld [vmem:[#allocation4 + $0x4f4] sm:$0xff]
    %v259 = vld [vmem:[#allocation4 + $0x4fc] sm:$0xf]
    %v260 = vld [vmem:[#allocation4 + $0x500] sm:$0xff]
    %v261 = vld [vmem:[#allocation4 + $0x508] sm:$0xff]
    %v262 = vld [vmem:[#allocation4 + $0x510] sm:$0xf]
    %v263 = vld [vmem:[#allocation4 + $0x514] sm:$0xff]
    %v264 = vld [vmem:[#allocation4 + $0x51c] sm:$0xff]
    %v265 = vld [vmem:[#allocation4 + $0x524] sm:$0xf]
    %v266 = vld [vmem:[#allocation4 + $0x528] sm:$0xff]
    %v267 = vld [vmem:[#allocation4 + $0x530] sm:$0xff]
    %v268 = vld [vmem:[#allocation4 + $0x538] sm:$0xf]
    %v269 = vld [vmem:[#allocation4 + $0x53c] sm:$0xff]
    %v270 = vld [vmem:[#allocation4 + $0x544] sm:$0xff]
    %v271 = vld [vmem:[#allocation4 + $0x54c] sm:$0xf]
    %v272 = vld [vmem:[#allocation4 + $0x550] sm:$0xff]
    %v273 = vld [vmem:[#allocation4 + $0x558] sm:$0xff]
    %v274 = vld [vmem:[#allocation4 + $0x560] sm:$0xf]
    %v275 = vld [vmem:[#allocation4 + $0x564] sm:$0xff]
    %v276 = vld [vmem:[#allocation4 + $0x56c] sm:$0xff]
    %v277 = vld [vmem:[#allocation4 + $0x574] sm:$0xf]
    %v278 = vld [vmem:[#allocation4 + $0x578] sm:$0xff]
    %v279 = vld [vmem:[#allocation4 + $0x580] sm:$0xff]
    %v280 = vld [vmem:[#allocation4 + $0x588] sm:$0xf]
    %v281 = vld [vmem:[#allocation4 + $0x58c] sm:$0xff]
    %v282 = vld [vmem:[#allocation4 + $0x594] sm:$0xff]
    %v283 = vld [vmem:[#allocation4 + $0x59c] sm:$0xf]
    %v284 = vld [vmem:[#allocation4 + $0x5a0] sm:$0xff]
    %v285 = vld [vmem:[#allocation4 + $0x5a8] sm:$0xff]
    %v286 = vld [vmem:[#allocation4 + $0x5b0] sm:$0xf]
    %v287 = vld [vmem:[#allocation4 + $0x5b4] sm:$0xff]
    %v288 = vld [vmem:[#allocation4 + $0x5bc] sm:$0xff]
    %v289 = vld [vmem:[#allocation4 + $0x5c4] sm:$0xf]
    %v290 = vld [vmem:[#allocation4 + $0x5c8] sm:$0xff]
    %v291 = vld [vmem:[#allocation4 + $0x5d0] sm:$0xff]
    %v292 = vld [vmem:[#allocation4 + $0x5d8] sm:$0xf]
    %v293 = vld [vmem:[#allocation4 + $0x5dc] sm:$0xff]
    %v294 = vld [vmem:[#allocation4 + $0x5e4] sm:$0xff]
    %v295 = vld [vmem:[#allocation4 + $0x5ec] sm:$0xf]
    %v296 = vld [vmem:[#allocation4 + $0x5f0] sm:$0xff]
    %v297 = vld [vmem:[#allocation4 + $0x5f8] sm:$0xff]
    %v298 = vld [vmem:[#allocation4 + $0x600] sm:$0xf]
    %v299 = vld [vmem:[#allocation4 + $0x604] sm:$0xff]
    %v300 = vld [vmem:[#allocation4 + $0x60c] sm:$0xff]
    %v301 = vld [vmem:[#allocation4 + $0x614] sm:$0xf]
    %v302 = vld [vmem:[#allocation4 + $0x618] sm:$0xff]
    %v303 = vld [vmem:[#allocation4 + $0x620] sm:$0xff]
    %v304 = vld [vmem:[#allocation4 + $0x628] sm:$0xf]
    %v305 = vld [vmem:[#allocation4 + $0x62c] sm:$0xff]
    %v306 = vld [vmem:[#allocation4 + $0x634] sm:$0xff]
    %v307 = vld [vmem:[#allocation4 + $0x63c] sm:$0xf]
    %v308 = vld [vmem:[%s2] sm:$0x1f]
    %v310 = vlaneseq
    %v311 = vshrl.u32 %v310, 7
    %v312 = vsub.s32 0, %v311
    %v313 = vrot.slane %v308, %v312
    %v314 = vlaneseq
    %v315 = vshrl.u32 %v314, 7
    %v316 = vsub.s32 1, %v315
    %v317 = vrot.slane %v308, %v316
    %v318 = vlaneseq
    %v319 = vshrl.u32 %v318, 7
    %v320 = vsub.s32 2, %v319
    %v321 = vrot.slane %v308, %v320
    %v322 = vlaneseq
    %v323 = vshrl.u32 %v322, 7
    %v324 = vsub.s32 3, %v323
    %v325 = vrot.slane %v308, %v324
    %v326 = vlaneseq
    %v327 = vshrl.u32 %v326, 7
    %v328 = vsub.s32 4, %v327
    %v329 = vrot.slane %v308, %v328
    %v575 = vunpack.c.l.b16 %v68
    %v576 = vunpack.c.h.b16 %v68
    %v577 = vunpack.c.l.b16 %v69
    %v578 = vunpack.c.h.b16 %v69
    %v579 = vunpack.c.l.b16 %v70
    %v580 = vunpack.c.l.b16 %v71
    %v581 = vunpack.c.h.b16 %v71
    %v582 = vunpack.c.l.b16 %v72
    %v583 = vunpack.c.h.b16 %v72
    %v584 = vunpack.c.l.b16 %v73
    %v585 = vunpack.c.l.b16 %v74
    %v586 = vunpack.c.h.b16 %v74
    %v587 = vunpack.c.l.b16 %v75
    %v588 = vunpack.c.h.b16 %v75
    %v589 = vunpack.c.l.b16 %v76
    %v590 = vunpack.c.l.b16 %v77
    %v591 = vunpack.c.h.b16 %v77
    %v592 = vunpack.c.l.b16 %v78
    %v593 = vunpack.c.h.b16 %v78
    %v594 = vunpack.c.l.b16 %v79
    %v595 = vunpack.c.l.b16 %v80
    %v596 = vunpack.c.h.b16 %v80
    %v597 = vunpack.c.l.b16 %v81
    %v598 = vunpack.c.h.b16 %v81
    %v599 = vunpack.c.l.b16 %v82
    %v600 = vunpack.c.l.b16 %v83
    %v601 = vunpack.c.h.b16 %v83
    %v602 = vunpack.c.l.b16 %v84
    %v603 = vunpack.c.h.b16 %v84
    %v604 = vunpack.c.l.b16 %v85
    %v605 = vunpack.c.l.b16 %v86
    %v606 = vunpack.c.h.b16 %v86
    %v607 = vunpack.c.l.b16 %v87
    %v608 = vunpack.c.h.b16 %v87
    %v609 = vunpack.c.l.b16 %v88
    %v610 = vunpack.c.l.b16 %v89
    %v611 = vunpack.c.h.b16 %v89
    %v612 = vunpack.c.l.b16 %v90
    %v613 = vunpack.c.h.b16 %v90
    %v614 = vunpack.c.l.b16 %v91
    %v615 = vunpack.c.l.b16 %v92
    %v616 = vunpack.c.h.b16 %v92
    %v617 = vunpack.c.l.b16 %v93
    %v618 = vunpack.c.h.b16 %v93
    %v619 = vunpack.c.l.b16 %v94
    %v620 = vunpack.c.l.b16 %v95
    %v621 = vunpack.c.h.b16 %v95
    %v622 = vunpack.c.l.b16 %v96
    %v623 = vunpack.c.h.b16 %v96
    %v624 = vunpack.c.l.b16 %v97
    %v625 = vunpack.c.l.b16 %v98
    %v626 = vunpack.c.h.b16 %v98
    %v627 = vunpack.c.l.b16 %v99
    %v628 = vunpack.c.h.b16 %v99
    %v629 = vunpack.c.l.b16 %v100
    %v630 = vunpack.c.l.b16 %v101
    %v631 = vunpack.c.h.b16 %v101
    %v632 = vunpack.c.l.b16 %v102
    %v633 = vunpack.c.h.b16 %v102
    %v634 = vunpack.c.l.b16 %v103
    %v635 = vunpack.c.l.b16 %v104
    %v636 = vunpack.c.h.b16 %v104
    %v637 = vunpack.c.l.b16 %v105
    %v638 = vunpack.c.h.b16 %v105
    %v639 = vunpack.c.l.b16 %v106
    %v640 = vunpack.c.l.b16 %v107
    %v641 = vunpack.c.h.b16 %v107
    %v642 = vunpack.c.l.b16 %v108
    %v643 = vunpack.c.h.b16 %v108
    %v644 = vunpack.c.l.b16 %v109
    %v645 = vunpack.c.l.b16 %v110
    %v646 = vunpack.c.h.b16 %v110
    %v647 = vunpack.c.l.b16 %v111
    %v648 = vunpack.c.h.b16 %v111
    %v649 = vunpack.c.l.b16 %v112
    %v650 = vunpack.c.l.b16 %v113
    %v651 = vunpack.c.h.b16 %v113
    %v652 = vunpack.c.l.b16 %v114
    %v653 = vunpack.c.h.b16 %v114
    %v654 = vunpack.c.l.b16 %v115
    %v655 = vunpack.c.l.b16 %v116
    %v656 = vunpack.c.h.b16 %v116
    %v657 = vunpack.c.l.b16 %v117
    %v658 = vunpack.c.h.b16 %v117
    %v659 = vunpack.c.l.b16 %v118
    %v660 = vunpack.c.l.b16 %v119
    %v661 = vunpack.c.h.b16 %v119
    %v662 = vunpack.c.l.b16 %v120
    %v663 = vunpack.c.h.b16 %v120
    %v664 = vunpack.c.l.b16 %v121
    %v665 = vunpack.c.l.b16 %v122
    %v666 = vunpack.c.h.b16 %v122
    %v667 = vunpack.c.l.b16 %v123
    %v668 = vunpack.c.h.b16 %v123
    %v669 = vunpack.c.l.b16 %v124
    %v670 = vunpack.c.l.b16 %v125
    %v671 = vunpack.c.h.b16 %v125
    %v672 = vunpack.c.l.b16 %v126
    %v673 = vunpack.c.h.b16 %v126
    %v674 = vunpack.c.l.b16 %v127
    %v675 = vunpack.c.l.b16 %v128
    %v676 = vunpack.c.h.b16 %v128
    %v677 = vunpack.c.l.b16 %v129
    %v678 = vunpack.c.h.b16 %v129
    %v679 = vunpack.c.l.b16 %v130
    %v680 = vunpack.c.l.b16 %v131
    %v681 = vunpack.c.h.b16 %v131
    %v682 = vunpack.c.l.b16 %v132
    %v683 = vunpack.c.h.b16 %v132
    %v684 = vunpack.c.l.b16 %v133
    %v685 = vunpack.c.l.b16 %v134
    %v686 = vunpack.c.h.b16 %v134
    %v687 = vunpack.c.l.b16 %v135
    %v688 = vunpack.c.h.b16 %v135
    %v689 = vunpack.c.l.b16 %v136
    %v690 = vunpack.c.l.b16 %v137
    %v691 = vunpack.c.h.b16 %v137
    %v692 = vunpack.c.l.b16 %v138
    %v693 = vunpack.c.h.b16 %v138
    %v694 = vunpack.c.l.b16 %v139
    %v695 = vunpack.c.l.b16 %v140
    %v696 = vunpack.c.h.b16 %v140
    %v697 = vunpack.c.l.b16 %v141
    %v698 = vunpack.c.h.b16 %v141
    %v699 = vunpack.c.l.b16 %v142
    %v700 = vunpack.c.l.b16 %v143
    %v701 = vunpack.c.h.b16 %v143
    %v702 = vunpack.c.l.b16 %v144
    %v703 = vunpack.c.h.b16 %v144
    %v704 = vunpack.c.l.b16 %v145
    %v705 = vunpack.c.l.b16 %v146
    %v706 = vunpack.c.h.b16 %v146
    %v707 = vunpack.c.l.b16 %v147
    %v708 = vunpack.c.h.b16 %v147
    %v709 = vunpack.c.l.b16 %v148
    %v710 = vunpack.c.l.b16 %v149
    %v711 = vunpack.c.h.b16 %v149
    %v712 = vunpack.c.l.b16 %v150
    %v713 = vunpack.c.h.b16 %v150
    %v714 = vunpack.c.l.b16 %v151
    %v715 = vunpack.c.l.b16 %v152
    %v716 = vunpack.c.h.b16 %v152
    %v717 = vunpack.c.l.b16 %v153
    %v718 = vunpack.c.h.b16 %v153
    %v719 = vunpack.c.l.b16 %v154
    %v720 = vunpack.c.l.b16 %v155
    %v721 = vunpack.c.h.b16 %v155
    %v722 = vunpack.c.l.b16 %v156
    %v723 = vunpack.c.h.b16 %v156
    %v724 = vunpack.c.l.b16 %v157
    %v725 = vunpack.c.l.b16 %v158
    %v726 = vunpack.c.h.b16 %v158
    %v727 = vunpack.c.l.b16 %v159
    %v728 = vunpack.c.h.b16 %v159
    %v729 = vunpack.c.l.b16 %v160
    %v730 = vunpack.c.l.b16 %v161
    %v731 = vunpack.c.h.b16 %v161
    %v732 = vunpack.c.l.b16 %v162
    %v733 = vunpack.c.h.b16 %v162
    %v734 = vunpack.c.l.b16 %v163
    %v735 = vunpack.c.l.b16 %v164
    %v736 = vunpack.c.h.b16 %v164
    %v737 = vunpack.c.l.b16 %v165
    %v738 = vunpack.c.h.b16 %v165
    %v739 = vunpack.c.l.b16 %v166
    %v740 = vunpack.c.l.b16 %v167
    %v741 = vunpack.c.h.b16 %v167
    %v742 = vunpack.c.l.b16 %v168
    %v743 = vunpack.c.h.b16 %v168
    %v744 = vunpack.c.l.b16 %v169
    %v745 = vunpack.c.l.b16 %v170
    %v746 = vunpack.c.h.b16 %v170
    %v747 = vunpack.c.l.b16 %v171
    %v748 = vunpack.c.h.b16 %v171
    %v749 = vunpack.c.l.b16 %v172
    %v750 = vunpack.c.l.b16 %v173
    %v751 = vunpack.c.h.b16 %v173
    %v752 = vunpack.c.l.b16 %v174
    %v753 = vunpack.c.h.b16 %v174
    %v754 = vunpack.c.l.b16 %v175
    %v755 = vunpack.c.l.b16 %v176
    %v756 = vunpack.c.h.b16 %v176
    %v757 = vunpack.c.l.b16 %v177
    %v758 = vunpack.c.h.b16 %v177
    %v759 = vunpack.c.l.b16 %v178
    %v760 = vunpack.c.l.b16 %v179
    %v761 = vunpack.c.h.b16 %v179
    %v762 = vunpack.c.l.b16 %v180
    %v763 = vunpack.c.h.b16 %v180
    %v764 = vunpack.c.l.b16 %v181
    %v765 = vunpack.c.l.b16 %v182
    %v766 = vunpack.c.h.b16 %v182
    %v767 = vunpack.c.l.b16 %v183
    %v768 = vunpack.c.h.b16 %v183
    %v769 = vunpack.c.l.b16 %v184
    %v770 = vunpack.c.l.b16 %v185
    %v771 = vunpack.c.h.b16 %v185
    %v772 = vunpack.c.l.b16 %v186
    %v773 = vunpack.c.h.b16 %v186
    %v774 = vunpack.c.l.b16 %v187
    %v775 = vunpack.c.l.b16 %v188
    %v776 = vunpack.c.h.b16 %v188
    %v777 = vunpack.c.l.b16 %v189
    %v778 = vunpack.c.h.b16 %v189
    %v779 = vunpack.c.l.b16 %v190
    %v780 = vunpack.c.l.b16 %v191
    %v781 = vunpack.c.h.b16 %v191
    %v782 = vunpack.c.l.b16 %v192
    %v783 = vunpack.c.h.b16 %v192
    %v784 = vunpack.c.l.b16 %v193
    %v785 = vunpack.c.l.b16 %v194
    %v786 = vunpack.c.h.b16 %v194
    %v787 = vunpack.c.l.b16 %v195
    %v788 = vunpack.c.h.b16 %v195
    %v789 = vunpack.c.l.b16 %v196
    %v790 = vunpack.c.l.b16 %v197
    %v791 = vunpack.c.h.b16 %v197
    %v792 = vunpack.c.l.b16 %v198
    %v793 = vunpack.c.h.b16 %v198
    %v794 = vunpack.c.l.b16 %v199
    %v795 = vunpack.c.l.b16 %v200
    %v796 = vunpack.c.h.b16 %v200
    %v797 = vunpack.c.l.b16 %v201
    %v798 = vunpack.c.h.b16 %v201
    %v799 = vunpack.c.l.b16 %v202
    %v800 = vunpack.c.l.b16 %v203
    %v801 = vunpack.c.h.b16 %v203
    %v802 = vunpack.c.l.b16 %v204
    %v803 = vunpack.c.h.b16 %v204
    %v804 = vunpack.c.l.b16 %v205
    %v805 = vunpack.c.l.b16 %v206
    %v806 = vunpack.c.h.b16 %v206
    %v807 = vunpack.c.l.b16 %v207
    %v808 = vunpack.c.h.b16 %v207
    %v809 = vunpack.c.l.b16 %v208
    %v810 = vunpack.c.l.b16 %v209
    %v811 = vunpack.c.h.b16 %v209
    %v812 = vunpack.c.l.b16 %v210
    %v813 = vunpack.c.h.b16 %v210
    %v814 = vunpack.c.l.b16 %v211
    %v815 = vunpack.c.l.b16 %v212
    %v816 = vunpack.c.h.b16 %v212
    %v817 = vunpack.c.l.b16 %v213
    %v818 = vunpack.c.h.b16 %v213
    %v819 = vunpack.c.l.b16 %v214
    %v820 = vunpack.c.l.b16 %v215
    %v821 = vunpack.c.h.b16 %v215
    %v822 = vunpack.c.l.b16 %v216
    %v823 = vunpack.c.h.b16 %v216
    %v824 = vunpack.c.l.b16 %v217
    %v825 = vunpack.c.l.b16 %v218
    %v826 = vunpack.c.h.b16 %v218
    %v827 = vunpack.c.l.b16 %v219
    %v828 = vunpack.c.h.b16 %v219
    %v829 = vunpack.c.l.b16 %v220
    %v830 = vunpack.c.l.b16 %v221
    %v831 = vunpack.c.h.b16 %v221
    %v832 = vunpack.c.l.b16 %v222
    %v833 = vunpack.c.h.b16 %v222
    %v834 = vunpack.c.l.b16 %v223
    %v835 = vunpack.c.l.b16 %v224
    %v836 = vunpack.c.h.b16 %v224
    %v837 = vunpack.c.l.b16 %v225
    %v838 = vunpack.c.h.b16 %v225
    %v839 = vunpack.c.l.b16 %v226
    %v840 = vunpack.c.l.b16 %v227
    %v841 = vunpack.c.h.b16 %v227
    %v842 = vunpack.c.l.b16 %v228
    %v843 = vunpack.c.h.b16 %v228
    %v844 = vunpack.c.l.b16 %v229
    %v845 = vunpack.c.l.b16 %v230
    %v846 = vunpack.c.h.b16 %v230
    %v847 = vunpack.c.l.b16 %v231
    %v848 = vunpack.c.h.b16 %v231
    %v849 = vunpack.c.l.b16 %v232
    %v850 = vunpack.c.l.b16 %v233
    %v851 = vunpack.c.h.b16 %v233
    %v852 = vunpack.c.l.b16 %v234
    %v853 = vunpack.c.h.b16 %v234
    %v854 = vunpack.c.l.b16 %v235
    %v855 = vunpack.c.l.b16 %v236
    %v856 = vunpack.c.h.b16 %v236
    %v857 = vunpack.c.l.b16 %v237
    %v858 = vunpack.c.h.b16 %v237
    %v859 = vunpack.c.l.b16 %v238
    %v860 = vunpack.c.l.b16 %v239
    %v861 = vunpack.c.h.b16 %v239
    %v862 = vunpack.c.l.b16 %v240
    %v863 = vunpack.c.h.b16 %v240
    %v864 = vunpack.c.l.b16 %v241
    %v865 = vunpack.c.l.b16 %v242
    %v866 = vunpack.c.h.b16 %v242
    %v867 = vunpack.c.l.b16 %v243
    %v868 = vunpack.c.h.b16 %v243
    %v869 = vunpack.c.l.b16 %v244
    %v870 = vunpack.c.l.b16 %v245
    %v871 = vunpack.c.h.b16 %v245
    %v872 = vunpack.c.l.b16 %v246
    %v873 = vunpack.c.h.b16 %v246
    %v874 = vunpack.c.l.b16 %v247
    %v875 = vunpack.c.l.b16 %v248
    %v876 = vunpack.c.h.b16 %v248
    %v877 = vunpack.c.l.b16 %v249
    %v878 = vunpack.c.h.b16 %v249
    %v879 = vunpack.c.l.b16 %v250
    %v880 = vunpack.c.l.b16 %v251
    %v881 = vunpack.c.h.b16 %v251
    %v882 = vunpack.c.l.b16 %v252
    %v883 = vunpack.c.h.b16 %v252
    %v884 = vunpack.c.l.b16 %v253
    %v885 = vunpack.c.l.b16 %v254
    %v886 = vunpack.c.h.b16 %v254
    %v887 = vunpack.c.l.b16 %v255
    %v888 = vunpack.c.h.b16 %v255
    %v889 = vunpack.c.l.b16 %v256
    %v890 = vunpack.c.l.b16 %v257
    %v891 = vunpack.c.h.b16 %v257
    %v892 = vunpack.c.l.b16 %v258
    %v893 = vunpack.c.h.b16 %v258
    %v894 = vunpack.c.l.b16 %v259
    %v895 = vunpack.c.l.b16 %v260
    %v896 = vunpack.c.h.b16 %v260
    %v897 = vunpack.c.l.b16 %v261
    %v898 = vunpack.c.h.b16 %v261
    %v899 = vunpack.c.l.b16 %v262
    %v900 = vunpack.c.l.b16 %v263
    %v901 = vunpack.c.h.b16 %v263
    %v902 = vunpack.c.l.b16 %v264
    %v903 = vunpack.c.h.b16 %v264
    %v904 = vunpack.c.l.b16 %v265
    %v905 = vunpack.c.l.b16 %v266
    %v906 = vunpack.c.h.b16 %v266
    %v907 = vunpack.c.l.b16 %v267
    %v908 = vunpack.c.h.b16 %v267
    %v909 = vunpack.c.l.b16 %v268
    %v910 = vunpack.c.l.b16 %v269
    %v911 = vunpack.c.h.b16 %v269
    %v912 = vunpack.c.l.b16 %v270
    %v913 = vunpack.c.h.b16 %v270
    %v914 = vunpack.c.l.b16 %v271
    %v915 = vunpack.c.l.b16 %v272
    %v916 = vunpack.c.h.b16 %v272
    %v917 = vunpack.c.l.b16 %v273
    %v918 = vunpack.c.h.b16 %v273
    %v919 = vunpack.c.l.b16 %v274
    %v920 = vunpack.c.l.b16 %v275
    %v921 = vunpack.c.h.b16 %v275
    %v922 = vunpack.c.l.b16 %v276
    %v923 = vunpack.c.h.b16 %v276
    %v924 = vunpack.c.l.b16 %v277
    %v925 = vunpack.c.l.b16 %v278
    %v926 = vunpack.c.h.b16 %v278
    %v927 = vunpack.c.l.b16 %v279
    %v928 = vunpack.c.h.b16 %v279
    %v929 = vunpack.c.l.b16 %v280
    %v930 = vunpack.c.l.b16 %v281
    %v931 = vunpack.c.h.b16 %v281
    %v932 = vunpack.c.l.b16 %v282
    %v933 = vunpack.c.h.b16 %v282
    %v934 = vunpack.c.l.b16 %v283
    %v935 = vunpack.c.l.b16 %v284
    %v936 = vunpack.c.h.b16 %v284
    %v937 = vunpack.c.l.b16 %v285
    %v938 = vunpack.c.h.b16 %v285
    %v939 = vunpack.c.l.b16 %v286
    %v940 = vunpack.c.l.b16 %v287
    %v941 = vunpack.c.h.b16 %v287
    %v942 = vunpack.c.l.b16 %v288
    %v943 = vunpack.c.h.b16 %v288
    %v944 = vunpack.c.l.b16 %v289
    %v945 = vunpack.c.l.b16 %v290
    %v946 = vunpack.c.h.b16 %v290
    %v947 = vunpack.c.l.b16 %v291
    %v948 = vunpack.c.h.b16 %v291
    %v949 = vunpack.c.l.b16 %v292
    %v950 = vunpack.c.l.b16 %v293
    %v951 = vunpack.c.h.b16 %v293
    %v952 = vunpack.c.l.b16 %v294
    %v953 = vunpack.c.h.b16 %v294
    %v954 = vunpack.c.l.b16 %v295
    %v955 = vunpack.c.l.b16 %v296
    %v956 = vunpack.c.h.b16 %v296
    %v957 = vunpack.c.l.b16 %v297
    %v958 = vunpack.c.h.b16 %v297
    %v959 = vunpack.c.l.b16 %v298
    %v960 = vunpack.c.l.b16 %v299
    %v961 = vunpack.c.h.b16 %v299
    %v962 = vunpack.c.l.b16 %v300
    %v963 = vunpack.c.h.b16 %v300
    %v964 = vunpack.c.l.b16 %v301
    %v965 = vunpack.c.l.b16 %v302
    %v966 = vunpack.c.h.b16 %v302
    %v967 = vunpack.c.l.b16 %v303
    %v968 = vunpack.c.h.b16 %v303
    %v969 = vunpack.c.l.b16 %v304
    %v970 = vunpack.c.l.b16 %v305
    %v971 = vunpack.c.h.b16 %v305
    %v972 = vunpack.c.l.b16 %v306
    %v973 = vunpack.c.h.b16 %v306
    %v974 = vunpack.c.l.b16 %v307
    %v975 = vpack.c.b16 %v580, %v575
    %v976 = vpack.c.b16 %v581, %v576
    %v977 = vpack.c.b16 %v582, %v577
    %v978 = vpack.c.b16 %v583, %v578
    %v979 = vpack.c.b16 %v584, %v579
    %v980 = vpack.c.b16 %v590, %v585
    %v981 = vpack.c.b16 %v591, %v586
    %v982 = vpack.c.b16 %v592, %v587
    %v983 = vpack.c.b16 %v593, %v588
    %v984 = vpack.c.b16 %v594, %v589
    %v985 = vpack.c.b16 %v600, %v595
    %v986 = vpack.c.b16 %v601, %v596
    %v987 = vpack.c.b16 %v602, %v597
    %v988 = vpack.c.b16 %v603, %v598
    %v989 = vpack.c.b16 %v604, %v599
    %v990 = vpack.c.b16 %v610, %v605
    %v991 = vpack.c.b16 %v611, %v606
    %v992 = vpack.c.b16 %v612, %v607
    %v993 = vpack.c.b16 %v613, %v608
    %v994 = vpack.c.b16 %v614, %v609
    %v995 = vpack.c.b16 %v620, %v615
    %v996 = vpack.c.b16 %v621, %v616
    %v997 = vpack.c.b16 %v622, %v617
    %v998 = vpack.c.b16 %v623, %v618
    %v999 = vpack.c.b16 %v624, %v619
    %v1000 = vpack.c.b16 %v630, %v625
    %v1001 = vpack.c.b16 %v631, %v626
    %v1002 = vpack.c.b16 %v632, %v627
    %v1003 = vpack.c.b16 %v633, %v628
    %v1004 = vpack.c.b16 %v634, %v629
    %v1005 = vpack.c.b16 %v640, %v635
    %v1006 = vpack.c.b16 %v641, %v636
    %v1007 = vpack.c.b16 %v642, %v637
    %v1008 = vpack.c.b16 %v643, %v638
    %v1009 = vpack.c.b16 %v644, %v639
    %v1010 = vpack.c.b16 %v650, %v645
    %v1011 = vpack.c.b16 %v651, %v646
    %v1012 = vpack.c.b16 %v652, %v647
    %v1013 = vpack.c.b16 %v653, %v648
    %v1014 = vpack.c.b16 %v654, %v649
    %v1015 = vpack.c.b16 %v660, %v655
    %v1016 = vpack.c.b16 %v661, %v656
    %v1017 = vpack.c.b16 %v662, %v657
    %v1018 = vpack.c.b16 %v663, %v658
    %v1019 = vpack.c.b16 %v664, %v659
    %v1020 = vpack.c.b16 %v670, %v665
    %v1021 = vpack.c.b16 %v671, %v666
    %v1022 = vpack.c.b16 %v672, %v667
    %v1023 = vpack.c.b16 %v673, %v668
    %v1024 = vpack.c.b16 %v674, %v669
    %v1025 = vpack.c.b16 %v680, %v675
    %v1026 = vpack.c.b16 %v681, %v676
    %v1027 = vpack.c.b16 %v682, %v677
    %v1028 = vpack.c.b16 %v683, %v678
    %v1029 = vpack.c.b16 %v684, %v679
    %v1030 = vpack.c.b16 %v690, %v685
    %v1031 = vpack.c.b16 %v691, %v686
    %v1032 = vpack.c.b16 %v692, %v687
    %v1033 = vpack.c.b16 %v693, %v688
    %v1034 = vpack.c.b16 %v694, %v689
    %v1035 = vpack.c.b16 %v700, %v695
    %v1036 = vpack.c.b16 %v701, %v696
    %v1037 = vpack.c.b16 %v702, %v697
    %v1038 = vpack.c.b16 %v703, %v698
    %v1039 = vpack.c.b16 %v704, %v699
    %v1040 = vpack.c.b16 %v710, %v705
    %v1041 = vpack.c.b16 %v711, %v706
    %v1042 = vpack.c.b16 %v712, %v707
    %v1043 = vpack.c.b16 %v713, %v708
    %v1044 = vpack.c.b16 %v714, %v709
    %v1045 = vpack.c.b16 %v720, %v715
    %v1046 = vpack.c.b16 %v721, %v716
    %v1047 = vpack.c.b16 %v722, %v717
    %v1048 = vpack.c.b16 %v723, %v718
    %v1049 = vpack.c.b16 %v724, %v719
    %v1050 = vpack.c.b16 %v730, %v725
    %v1051 = vpack.c.b16 %v731, %v726
    %v1052 = vpack.c.b16 %v732, %v727
    %v1053 = vpack.c.b16 %v733, %v728
    %v1054 = vpack.c.b16 %v734, %v729
    %v1055 = vpack.c.b16 %v740, %v735
    %v1056 = vpack.c.b16 %v741, %v736
    %v1057 = vpack.c.b16 %v742, %v737
    %v1058 = vpack.c.b16 %v743, %v738
    %v1059 = vpack.c.b16 %v744, %v739
    %v1060 = vpack.c.b16 %v750, %v745
    %v1061 = vpack.c.b16 %v751, %v746
    %v1062 = vpack.c.b16 %v752, %v747
    %v1063 = vpack.c.b16 %v753, %v748
    %v1064 = vpack.c.b16 %v754, %v749
    %v1065 = vpack.c.b16 %v760, %v755
    %v1066 = vpack.c.b16 %v761, %v756
    %v1067 = vpack.c.b16 %v762, %v757
    %v1068 = vpack.c.b16 %v763, %v758
    %v1069 = vpack.c.b16 %v764, %v759
    %v1070 = vpack.c.b16 %v770, %v765
    %v1071 = vpack.c.b16 %v771, %v766
    %v1072 = vpack.c.b16 %v772, %v767
    %v1073 = vpack.c.b16 %v773, %v768
    %v1074 = vpack.c.b16 %v774, %v769
    %v1075 = vpack.c.b16 %v780, %v775
    %v1076 = vpack.c.b16 %v781, %v776
    %v1077 = vpack.c.b16 %v782, %v777
    %v1078 = vpack.c.b16 %v783, %v778
    %v1079 = vpack.c.b16 %v784, %v779
    %v1080 = vpack.c.b16 %v790, %v785
    %v1081 = vpack.c.b16 %v791, %v786
    %v1082 = vpack.c.b16 %v792, %v787
    %v1083 = vpack.c.b16 %v793, %v788
    %v1084 = vpack.c.b16 %v794, %v789
    %v1085 = vpack.c.b16 %v800, %v795
    %v1086 = vpack.c.b16 %v801, %v796
    %v1087 = vpack.c.b16 %v802, %v797
    %v1088 = vpack.c.b16 %v803, %v798
    %v1089 = vpack.c.b16 %v804, %v799
    %v1090 = vpack.c.b16 %v810, %v805
    %v1091 = vpack.c.b16 %v811, %v806
    %v1092 = vpack.c.b16 %v812, %v807
    %v1093 = vpack.c.b16 %v813, %v808
    %v1094 = vpack.c.b16 %v814, %v809
    %v1095 = vpack.c.b16 %v820, %v815
    %v1096 = vpack.c.b16 %v821, %v816
    %v1097 = vpack.c.b16 %v822, %v817
    %v1098 = vpack.c.b16 %v823, %v818
    %v1099 = vpack.c.b16 %v824, %v819
    %v1100 = vpack.c.b16 %v830, %v825
    %v1101 = vpack.c.b16 %v831, %v826
    %v1102 = vpack.c.b16 %v832, %v827
    %v1103 = vpack.c.b16 %v833, %v828
    %v1104 = vpack.c.b16 %v834, %v829
    %v1105 = vpack.c.b16 %v840, %v835
    %v1106 = vpack.c.b16 %v841, %v836
    %v1107 = vpack.c.b16 %v842, %v837
    %v1108 = vpack.c.b16 %v843, %v838
    %v1109 = vpack.c.b16 %v844, %v839
    %v1110 = vpack.c.b16 %v850, %v845
    %v1111 = vpack.c.b16 %v851, %v846
    %v1112 = vpack.c.b16 %v852, %v847
    %v1113 = vpack.c.b16 %v853, %v848
    %v1114 = vpack.c.b16 %v854, %v849
    %v1115 = vpack.c.b16 %v860, %v855
    %v1116 = vpack.c.b16 %v861, %v856
    %v1117 = vpack.c.b16 %v862, %v857
    %v1118 = vpack.c.b16 %v863, %v858
    %v1119 = vpack.c.b16 %v864, %v859
    %v1120 = vpack.c.b16 %v870, %v865
    %v1121 = vpack.c.b16 %v871, %v866
    %v1122 = vpack.c.b16 %v872, %v867
    %v1123 = vpack.c.b16 %v873, %v868
    %v1124 = vpack.c.b16 %v874, %v869
    %v1125 = vpack.c.b16 %v880, %v875
    %v1126 = vpack.c.b16 %v881, %v876
    %v1127 = vpack.c.b16 %v882, %v877
    %v1128 = vpack.c.b16 %v883, %v878
    %v1129 = vpack.c.b16 %v884, %v879
    %v1130 = vpack.c.b16 %v890, %v885
    %v1131 = vpack.c.b16 %v891, %v886
    %v1132 = vpack.c.b16 %v892, %v887
    %v1133 = vpack.c.b16 %v893, %v888
    %v1134 = vpack.c.b16 %v894, %v889
    %v1135 = vpack.c.b16 %v900, %v895
    %v1136 = vpack.c.b16 %v901, %v896
    %v1137 = vpack.c.b16 %v902, %v897
    %v1138 = vpack.c.b16 %v903, %v898
    %v1139 = vpack.c.b16 %v904, %v899
    %v1140 = vpack.c.b16 %v910, %v905
    %v1141 = vpack.c.b16 %v911, %v906
    %v1142 = vpack.c.b16 %v912, %v907
    %v1143 = vpack.c.b16 %v913, %v908
    %v1144 = vpack.c.b16 %v914, %v909
    %v1145 = vpack.c.b16 %v920, %v915
    %v1146 = vpack.c.b16 %v921, %v916
    %v1147 = vpack.c.b16 %v922, %v917
    %v1148 = vpack.c.b16 %v923, %v918
    %v1149 = vpack.c.b16 %v924, %v919
    %v1150 = vpack.c.b16 %v930, %v925
    %v1151 = vpack.c.b16 %v931, %v926
    %v1152 = vpack.c.b16 %v932, %v927
    %v1153 = vpack.c.b16 %v933, %v928
    %v1154 = vpack.c.b16 %v934, %v929
    %v1155 = vpack.c.b16 %v940, %v935
    %v1156 = vpack.c.b16 %v941, %v936
    %v1157 = vpack.c.b16 %v942, %v937
    %v1158 = vpack.c.b16 %v943, %v938
    %v1159 = vpack.c.b16 %v944, %v939
    %v1160 = vpack.c.b16 %v950, %v945
    %v1161 = vpack.c.b16 %v951, %v946
    %v1162 = vpack.c.b16 %v952, %v947
    %v1163 = vpack.c.b16 %v953, %v948
    %v1164 = vpack.c.b16 %v954, %v949
    %v1165 = vpack.c.b16 %v960, %v955
    %v1166 = vpack.c.b16 %v961, %v956
    %v1167 = vpack.c.b16 %v962, %v957
    %v1168 = vpack.c.b16 %v963, %v958
    %v1169 = vpack.c.b16 %v964, %v959
    %v1170 = vpack.c.b16 %v970, %v965
    %v1171 = vpack.c.b16 %v971, %v966
    %v1172 = vpack.c.b16 %v972, %v967
    %v1173 = vpack.c.b16 %v973, %v968
    %v1174 = vpack.c.b16 %v974, %v969
    %1375 = vmatprep.subr.bf16.mxu0 %v1011
    %1376 = vmatpush1.bf16.msra.mxu0 %v1010
    %1377 = vmatprep.subr.bf16.mxu0 %v1006
    %1378 = vmatpush1.bf16.msra.mxu0 %v1005
    %1379 = vmatprep.subr.bf16.mxu0 %v1001
    %1380 = vmatpush1.bf16.msra.mxu0 %v1000
    %1381 = vmatprep.subr.bf16.mxu0 %v996
    %1382 = vmatpush1.bf16.msra.mxu0 %v995
    %1383 = vmatprep.subr.bf16.mxu0 %v991
    %1384 = vmatpush1.bf16.msra.mxu0 %v990
    %1385 = vmatprep.subr.bf16.mxu0 %v986
    %1386 = vmatpush1.bf16.msra.mxu0 %v985
    %1387 = vmatprep.subr.bf16.mxu0 %v981
    %1388 = vmatpush1.bf16.msra.mxu0 %v980
    %1389 = vmatprep.subr.bf16.mxu0 %v976
    %1390 = vmatpush1.bf16.msra.mxu0 %v975
    %1391 = vmatprep.subr.bf16.mxu0 %v1051
    %1392 = vmatpush2.bf16.msra.mxu0 %v1050
    %1393 = vmatprep.subr.bf16.mxu0 %v1046
    %1394 = vmatpush2.bf16.msra.mxu0 %v1045
    %1395 = vmatprep.subr.bf16.mxu0 %v1041
    %1396 = vmatpush2.bf16.msra.mxu0 %v1040
    %1397 = vmatprep.subr.bf16.mxu0 %v1036
    %1398 = vmatpush2.bf16.msra.mxu0 %v1035
    %1399 = vmatprep.subr.bf16.mxu0 %v1031
    %1400 = vmatpush2.bf16.msra.mxu0 %v1030
    %1401 = vmatprep.subr.bf16.mxu0 %v1026
    %1402 = vmatpush2.bf16.msra.mxu0 %v1025
    %1403 = vmatprep.subr.bf16.mxu0 %v1021
    %1404 = vmatpush2.bf16.msra.mxu0 %v1020
    %1405 = vmatprep.subr.bf16.mxu0 %v1016
    %1406 = vmatpush2.bf16.msra.mxu0 %v1015
    %1407 = vmatprep.mubr.bf16.mxu0 %v59
    %1408 = vmatmul.mubr.bf16.gmra.mxu0 %v58
    %v1409 = vpop.f32.mrf.mxu0
    %v1410 = vadd.f32 %v313, %v1409
    %v1411 = vpop.f32.mrf.mxu0
    %v1412 = vadd.f32 %v317, %v1411
    %v1413 = vpop.f32.mrf.mxu0
    %v1414 = vadd.f32 %v313, %v1413
    %v1415 = vpop.f32.mrf.mxu0
    %v1416 = vadd.f32 %v317, %v1415
    %1417 = vmatprep.mubr.bf16.mxu0 %v64
    %1418 = vmatmul.mubr.bf16.gmra.mxu0 %v63
    %v1419 = vpop.f32.mrf.mxu0
    %v1420 = vadd.f32 %v313, %v1419
    %v1421 = vpop.f32.mrf.mxu0
    %v1422 = vadd.f32 %v317, %v1421
    %v1423 = vpop.f32.mrf.mxu0
    %v1424 = vpop.f32.mrf.mxu0
    %1425 = vdwg.mxu0
    %1426 = vmatprep.subr.bf16.mxu0 %v1091
    %1427 = vmatpush1.bf16.msra.mxu0 %v1090
    %1428 = vmatprep.subr.bf16.mxu0 %v1086
    %1429 = vmatpush1.bf16.msra.mxu0 %v1085
    %1430 = vmatprep.subr.bf16.mxu0 %v1081
    %1431 = vmatpush1.bf16.msra.mxu0 %v1080
    %1432 = vmatprep.subr.bf16.mxu0 %v1076
    %1433 = vmatpush1.bf16.msra.mxu0 %v1075
    %1434 = vmatprep.subr.bf16.mxu0 %v1071
    %1435 = vmatpush1.bf16.msra.mxu0 %v1070
    %1436 = vmatprep.subr.bf16.mxu0 %v1066
    %1437 = vmatpush1.bf16.msra.mxu0 %v1065
    %1438 = vmatprep.subr.bf16.mxu0 %v1061
    %1439 = vmatpush1.bf16.msra.mxu0 %v1060
    %1440 = vmatprep.subr.bf16.mxu0 %v1056
    %1441 = vmatpush1.bf16.msra.mxu0 %v1055
    %1442 = vmatprep.subr.bf16.mxu0 %v1131
    %1443 = vmatpush2.bf16.msra.mxu0 %v1130
    %1444 = vmatprep.subr.bf16.mxu0 %v1126
    %1445 = vmatpush2.bf16.msra.mxu0 %v1125
    %1446 = vmatprep.subr.bf16.mxu0 %v1121
    %1447 = vmatpush2.bf16.msra.mxu0 %v1120
    %1448 = vmatprep.subr.bf16.mxu0 %v1116
    %1449 = vmatpush2.bf16.msra.mxu0 %v1115
    %1450 = vmatprep.subr.bf16.mxu0 %v1111
    %1451 = vmatpush2.bf16.msra.mxu0 %v1110
    %1452 = vmatprep.subr.bf16.mxu0 %v1106
    %1453 = vmatpush2.bf16.msra.mxu0 %v1105
    %1454 = vmatprep.subr.bf16.mxu0 %v1101
    %1455 = vmatpush2.bf16.msra.mxu0 %v1100
    %1456 = vmatprep.subr.bf16.mxu0 %v1096
    %1457 = vmatpush2.bf16.msra.mxu0 %v1095
    %1458 = vmatprep.mubr.bf16.mxu0 %v61
    %1459 = vmatmul.mubr.bf16.gmra.mxu0 %v60
    %v1460 = vpop.f32.mrf.mxu0
    %v1461 = vadd.f32 %v1410, %v1460
    %v1462 = vpop.f32.mrf.mxu0
    %v1463 = vadd.f32 %v1412, %v1462
    %v1464 = vpop.f32.mrf.mxu0
    %v1465 = vadd.f32 %v1414, %v1464
    %v1466 = vpop.f32.mrf.mxu0
    %v1467 = vadd.f32 %v1416, %v1466
    %1468 = vmatprep.mubr.bf16.mxu0 %v66
    %1469 = vmatmul.mubr.bf16.gmra.mxu0 %v65
    %v1470 = vpop.f32.mrf.mxu0
    %v1471 = vadd.f32 %v1420, %v1470
    %v1472 = vpop.f32.mrf.mxu0
    %v1473 = vadd.f32 %v1422, %v1472
    %v1474 = vpop.f32.mrf.mxu0
    %v1475 = vpop.f32.mrf.mxu0
    %1476 = vdwg.mxu0
    %1477 = vmatprep.subr.bf16.mxu0 %v1171
    %1478 = vmatpush1.bf16.msra.mxu0 %v1170
    %1479 = vmatprep.subr.bf16.mxu0 %v1166
    %1480 = vmatpush1.bf16.msra.mxu0 %v1165
    %1481 = vmatprep.subr.bf16.mxu0 %v1161
    %1482 = vmatpush1.bf16.msra.mxu0 %v1160
    %1483 = vmatprep.subr.bf16.mxu0 %v1156
    %1484 = vmatpush1.bf16.msra.mxu0 %v1155
    %1485 = vmatprep.subr.bf16.mxu0 %v1151
    %1486 = vmatpush1.bf16.msra.mxu0 %v1150
    %1487 = vmatprep.subr.bf16.mxu0 %v1146
    %1488 = vmatpush1.bf16.msra.mxu0 %v1145
    %1489 = vmatprep.subr.bf16.mxu0 %v1141
    %1490 = vmatpush1.bf16.msra.mxu0 %v1140
    %1491 = vmatprep.subr.bf16.mxu0 %v1136
    %1492 = vmatpush1.bf16.msra.mxu0 %v1135
    %1493 = vmatprep.subr.bf16.mxu0 0
    %1494 = vmatpush2.bf16.msra.mxu0 0
    %1495 = vmatprep.subr.bf16.mxu0 0
    %1496 = vmatpush2.bf16.msra.mxu0 0
    %1497 = vmatprep.subr.bf16.mxu0 0
    %1498 = vmatpush2.bf16.msra.mxu0 0
    %1499 = vmatprep.subr.bf16.mxu0 0
    %1500 = vmatpush2.bf16.msra.mxu0 0
    %1501 = vmatprep.subr.bf16.mxu0 0
    %1502 = vmatpush2.bf16.msra.mxu0 0
    %1503 = vmatprep.subr.bf16.mxu0 0
    %1504 = vmatpush2.bf16.msra.mxu0 0
    %1505 = vmatprep.subr.bf16.mxu0 0
    %1506 = vmatpush2.bf16.msra.mxu0 0
    %1507 = vmatprep.subr.bf16.mxu0 0
    %1508 = vmatpush2.bf16.msra.mxu0 0
    %1509 = vmatprep.mubr.bf16.mxu0 0
    %1510 = vmatmul.mubr.bf16.gmra.mxu0 %v62
    %v1511 = vpop.f32.mrf.mxu0
    %v1512 = vadd.f32 %v1461, %v1511
    %v1513 = vpop.f32.mrf.mxu0
    %v1514 = vadd.f32 %v1463, %v1513
    %v1515 = vpop.f32.mrf.mxu0
    %v1516 = vadd.f32 %v1465, %v1515
    %v1517 = vpop.f32.mrf.mxu0
    %v1518 = vadd.f32 %v1467, %v1517
    %1519 = vmatprep.mubr.bf16.mxu0 0
    %1520 = vmatmul.mubr.bf16.gmra.mxu0 %v67
    %v1521 = vpop.f32.mrf.mxu0
    %v1522 = vadd.f32 %v1471, %v1521
    %v1523 = vpop.f32.mrf.mxu0
    %v1524 = vadd.f32 %v1473, %v1523
    %v1525 = vpop.f32.mrf.mxu0
    %v1526 = vpop.f32.mrf.mxu0
    %1527 = vdwg.mxu0
    %1528 = vmatprep.subr.bf16.mxu0 %v1013
    %1529 = vmatpush1.bf16.msra.mxu0 %v1012
    %1530 = vmatprep.subr.bf16.mxu0 %v1008
    %1531 = vmatpush1.bf16.msra.mxu0 %v1007
    %1532 = vmatprep.subr.bf16.mxu0 %v1003
    %1533 = vmatpush1.bf16.msra.mxu0 %v1002
    %1534 = vmatprep.subr.bf16.mxu0 %v998
    %1535 = vmatpush1.bf16.msra.mxu0 %v997
    %1536 = vmatprep.subr.bf16.mxu0 %v993
    %1537 = vmatpush1.bf16.msra.mxu0 %v992
    %1538 = vmatprep.subr.bf16.mxu0 %v988
    %1539 = vmatpush1.bf16.msra.mxu0 %v987
    %1540 = vmatprep.subr.bf16.mxu0 %v983
    %1541 = vmatpush1.bf16.msra.mxu0 %v982
    %1542 = vmatprep.subr.bf16.mxu0 %v978
    %1543 = vmatpush1.bf16.msra.mxu0 %v977
    %1544 = vmatprep.subr.bf16.mxu0 %v1053
    %1545 = vmatpush2.bf16.msra.mxu0 %v1052
    %1546 = vmatprep.subr.bf16.mxu0 %v1048
    %1547 = vmatpush2.bf16.msra.mxu0 %v1047
    %1548 = vmatprep.subr.bf16.mxu0 %v1043
    %1549 = vmatpush2.bf16.msra.mxu0 %v1042
    %1550 = vmatprep.subr.bf16.mxu0 %v1038
    %1551 = vmatpush2.bf16.msra.mxu0 %v1037
    %1552 = vmatprep.subr.bf16.mxu0 %v1033
    %1553 = vmatpush2.bf16.msra.mxu0 %v1032
    %1554 = vmatprep.subr.bf16.mxu0 %v1028
    %1555 = vmatpush2.bf16.msra.mxu0 %v1027
    %1556 = vmatprep.subr.bf16.mxu0 %v1023
    %1557 = vmatpush2.bf16.msra.mxu0 %v1022
    %1558 = vmatprep.subr.bf16.mxu0 %v1018
    %1559 = vmatpush2.bf16.msra.mxu0 %v1017
    %1560 = vmatprep.mubr.bf16.mxu0 %v59
    %1561 = vmatmul.mubr.bf16.gmra.mxu0 %v58
    %v1562 = vpop.f32.mrf.mxu0
    %v1563 = vadd.f32 %v321, %v1562
    %v1564 = vpop.f32.mrf.mxu0
    %v1565 = vadd.f32 %v325, %v1564
    %v1566 = vpop.f32.mrf.mxu0
    %v1567 = vadd.f32 %v321, %v1566
    %v1568 = vpop.f32.mrf.mxu0
    %v1569 = vadd.f32 %v325, %v1568
    %1570 = vmatprep.mubr.bf16.mxu0 %v64
    %1571 = vmatmul.mubr.bf16.gmra.mxu0 %v63
    %v1572 = vpop.f32.mrf.mxu0
    %v1573 = vadd.f32 %v321, %v1572
    %v1574 = vpop.f32.mrf.mxu0
    %v1575 = vadd.f32 %v325, %v1574
    %v1576 = vpop.f32.mrf.mxu0
    %v1577 = vpop.f32.mrf.mxu0
    %1578 = vdwg.mxu0
    %1579 = vmatprep.subr.bf16.mxu0 %v1093
    %1580 = vmatpush1.bf16.msra.mxu0 %v1092
    %1581 = vmatprep.subr.bf16.mxu0 %v1088
    %1582 = vmatpush1.bf16.msra.mxu0 %v1087
    %1583 = vmatprep.subr.bf16.mxu0 %v1083
    %1584 = vmatpush1.bf16.msra.mxu0 %v1082
    %1585 = vmatprep.subr.bf16.mxu0 %v1078
    %1586 = vmatpush1.bf16.msra.mxu0 %v1077
    %1587 = vmatprep.subr.bf16.mxu0 %v1073
    %1588 = vmatpush1.bf16.msra.mxu0 %v1072
    %1589 = vmatprep.subr.bf16.mxu0 %v1068
    %1590 = vmatpush1.bf16.msra.mxu0 %v1067
    %1591 = vmatprep.subr.bf16.mxu0 %v1063
    %1592 = vmatpush1.bf16.msra.mxu0 %v1062
    %1593 = vmatprep.subr.bf16.mxu0 %v1058
    %1594 = vmatpush1.bf16.msra.mxu0 %v1057
    %1595 = vmatprep.subr.bf16.mxu0 %v1133
    %1596 = vmatpush2.bf16.msra.mxu0 %v1132
    %1597 = vmatprep.subr.bf16.mxu0 %v1128
    %1598 = vmatpush2.bf16.msra.mxu0 %v1127
    %1599 = vmatprep.subr.bf16.mxu0 %v1123
    %1600 = vmatpush2.bf16.msra.mxu0 %v1122
    %1601 = vmatprep.subr.bf16.mxu0 %v1118
    %1602 = vmatpush2.bf16.msra.mxu0 %v1117
    %1603 = vmatprep.subr.bf16.mxu0 %v1113
    %1604 = vmatpush2.bf16.msra.mxu0 %v1112
    %1605 = vmatprep.subr.bf16.mxu0 %v1108
    %1606 = vmatpush2.bf16.msra.mxu0 %v1107
    %1607 = vmatprep.subr.bf16.mxu0 %v1103
    %1608 = vmatpush2.bf16.msra.mxu0 %v1102
    %1609 = vmatprep.subr.bf16.mxu0 %v1098
    %1610 = vmatpush2.bf16.msra.mxu0 %v1097
    %1611 = vmatprep.mubr.bf16.mxu0 %v61
    %1612 = vmatmul.mubr.bf16.gmra.mxu0 %v60
    %v1613 = vpop.f32.mrf.mxu0
    %v1614 = vadd.f32 %v1563, %v1613
    %v1615 = vpop.f32.mrf.mxu0
    %v1616 = vadd.f32 %v1565, %v1615
    %v1617 = vpop.f32.mrf.mxu0
    %v1618 = vadd.f32 %v1567, %v1617
    %v1619 = vpop.f32.mrf.mxu0
    %v1620 = vadd.f32 %v1569, %v1619
    %1621 = vmatprep.mubr.bf16.mxu0 %v66
    %1622 = vmatmul.mubr.bf16.gmra.mxu0 %v65
    %v1623 = vpop.f32.mrf.mxu0
    %v1624 = vadd.f32 %v1573, %v1623
    %v1625 = vpop.f32.mrf.mxu0
    %v1626 = vadd.f32 %v1575, %v1625
    %v1627 = vpop.f32.mrf.mxu0
    %v1628 = vpop.f32.mrf.mxu0
    %1629 = vdwg.mxu0
    %1630 = vmatprep.subr.bf16.mxu0 %v1173
    %1631 = vmatpush1.bf16.msra.mxu0 %v1172
    %1632 = vmatprep.subr.bf16.mxu0 %v1168
    %1633 = vmatpush1.bf16.msra.mxu0 %v1167
    %1634 = vmatprep.subr.bf16.mxu0 %v1163
    %1635 = vmatpush1.bf16.msra.mxu0 %v1162
    %1636 = vmatprep.subr.bf16.mxu0 %v1158
    %1637 = vmatpush1.bf16.msra.mxu0 %v1157
    %1638 = vmatprep.subr.bf16.mxu0 %v1153
    %1639 = vmatpush1.bf16.msra.mxu0 %v1152
    %1640 = vmatprep.subr.bf16.mxu0 %v1148
    %1641 = vmatpush1.bf16.msra.mxu0 %v1147
    %1642 = vmatprep.subr.bf16.mxu0 %v1143
    %1643 = vmatpush1.bf16.msra.mxu0 %v1142
    %1644 = vmatprep.subr.bf16.mxu0 %v1138
    %1645 = vmatpush1.bf16.msra.mxu0 %v1137
    %1646 = vmatprep.subr.bf16.mxu0 0
    %1647 = vmatpush2.bf16.msra.mxu0 0
    %1648 = vmatprep.subr.bf16.mxu0 0
    %1649 = vmatpush2.bf16.msra.mxu0 0
    %1650 = vmatprep.subr.bf16.mxu0 0
    %1651 = vmatpush2.bf16.msra.mxu0 0
    %1652 = vmatprep.subr.bf16.mxu0 0
    %1653 = vmatpush2.bf16.msra.mxu0 0
    %1654 = vmatprep.subr.bf16.mxu0 0
    %1655 = vmatpush2.bf16.msra.mxu0 0
    %1656 = vmatprep.subr.bf16.mxu0 0
    %1657 = vmatpush2.bf16.msra.mxu0 0
    %1658 = vmatprep.subr.bf16.mxu0 0
    %1659 = vmatpush2.bf16.msra.mxu0 0
    %1660 = vmatprep.subr.bf16.mxu0 0
    %1661 = vmatpush2.bf16.msra.mxu0 0
    %1662 = vmatprep.mubr.bf16.mxu0 0
    %1663 = vmatmul.mubr.bf16.gmra.mxu0 %v62
    %v1664 = vpop.f32.mrf.mxu0
    %v1665 = vadd.f32 %v1614, %v1664
    %v1666 = vpop.f32.mrf.mxu0
    %v1667 = vadd.f32 %v1616, %v1666
    %v1668 = vpop.f32.mrf.mxu0
    %v1669 = vadd.f32 %v1618, %v1668
    %v1670 = vpop.f32.mrf.mxu0
    %v1671 = vadd.f32 %v1620, %v1670
    %1672 = vmatprep.mubr.bf16.mxu0 0
    %1673 = vmatmul.mubr.bf16.gmra.mxu0 %v67
    %v1674 = vpop.f32.mrf.mxu0
    %v1675 = vadd.f32 %v1624, %v1674
    %v1676 = vpop.f32.mrf.mxu0
    %v1677 = vadd.f32 %v1626, %v1676
    %v1678 = vpop.f32.mrf.mxu0
    %v1679 = vpop.f32.mrf.mxu0
    %1680 = vdwg.mxu0
    %1681 = vmatprep.subr.bf16.mxu0 0
    %1682 = vmatpush1.bf16.msra.mxu0 %v1014
    %1683 = vmatprep.subr.bf16.mxu0 0
    %1684 = vmatpush1.bf16.msra.mxu0 %v1009
    %1685 = vmatprep.subr.bf16.mxu0 0
    %1686 = vmatpush1.bf16.msra.mxu0 %v1004
    %1687 = vmatprep.subr.bf16.mxu0 0
    %1688 = vmatpush1.bf16.msra.mxu0 %v999
    %1689 = vmatprep.subr.bf16.mxu0 0
    %1690 = vmatpush1.bf16.msra.mxu0 %v994
    %1691 = vmatprep.subr.bf16.mxu0 0
    %1692 = vmatpush1.bf16.msra.mxu0 %v989
    %1693 = vmatprep.subr.bf16.mxu0 0
    %1694 = vmatpush1.bf16.msra.mxu0 %v984
    %1695 = vmatprep.subr.bf16.mxu0 0
    %1696 = vmatpush1.bf16.msra.mxu0 %v979
    %1697 = vmatprep.subr.bf16.mxu0 0
    %1698 = vmatpush2.bf16.msra.mxu0 %v1054
    %1699 = vmatprep.subr.bf16.mxu0 0
    %1700 = vmatpush2.bf16.msra.mxu0 %v1049
    %1701 = vmatprep.subr.bf16.mxu0 0
    %1702 = vmatpush2.bf16.msra.mxu0 %v1044
    %1703 = vmatprep.subr.bf16.mxu0 0
    %1704 = vmatpush2.bf16.msra.mxu0 %v1039
    %1705 = vmatprep.subr.bf16.mxu0 0
    %1706 = vmatpush2.bf16.msra.mxu0 %v1034
    %1707 = vmatprep.subr.bf16.mxu0 0
    %1708 = vmatpush2.bf16.msra.mxu0 %v1029
    %1709 = vmatprep.subr.bf16.mxu0 0
    %1710 = vmatpush2.bf16.msra.mxu0 %v1024
    %1711 = vmatprep.subr.bf16.mxu0 0
    %1712 = vmatpush2.bf16.msra.mxu0 %v1019
    %1713 = vmatprep.mubr.bf16.mxu0 %v59
    %1714 = vmatmul.mubr.bf16.gmra.mxu0 %v58
    %v1715 = vpop.f32.mrf.mxu0
    %v1716 = vadd.f32 %v329, %v1715
    %v1717 = vpop.f32.mrf.mxu0
    %v1718 = vpop.f32.mrf.mxu0
    %v1719 = vadd.f32 %v329, %v1718
    %v1720 = vpop.f32.mrf.mxu0
    %1721 = vmatprep.mubr.bf16.mxu0 %v64
    %1722 = vmatmul.mubr.bf16.gmra.mxu0 %v63
    %v1723 = vpop.f32.mrf.mxu0
    %v1724 = vadd.f32 %v329, %v1723
    %v1725 = vpop.f32.mrf.mxu0
    %v1726 = vpop.f32.mrf.mxu0
    %v1727 = vpop.f32.mrf.mxu0
    %1728 = vdwg.mxu0
    %1729 = vmatprep.subr.bf16.mxu0 0
    %1730 = vmatpush1.bf16.msra.mxu0 %v1094
    %1731 = vmatprep.subr.bf16.mxu0 0
    %1732 = vmatpush1.bf16.msra.mxu0 %v1089
    %1733 = vmatprep.subr.bf16.mxu0 0
    %1734 = vmatpush1.bf16.msra.mxu0 %v1084
    %1735 = vmatprep.subr.bf16.mxu0 0
    %1736 = vmatpush1.bf16.msra.mxu0 %v1079
    %1737 = vmatprep.subr.bf16.mxu0 0
    %1738 = vmatpush1.bf16.msra.mxu0 %v1074
    %1739 = vmatprep.subr.bf16.mxu0 0
    %1740 = vmatpush1.bf16.msra.mxu0 %v1069
    %1741 = vmatprep.subr.bf16.mxu0 0
    %1742 = vmatpush1.bf16.msra.mxu0 %v1064
    %1743 = vmatprep.subr.bf16.mxu0 0
    %1744 = vmatpush1.bf16.msra.mxu0 %v1059
    %1745 = vmatprep.subr.bf16.mxu0 0
    %1746 = vmatpush2.bf16.msra.mxu0 %v1134
    %1747 = vmatprep.subr.bf16.mxu0 0
    %1748 = vmatpush2.bf16.msra.mxu0 %v1129
    %1749 = vmatprep.subr.bf16.mxu0 0
    %1750 = vmatpush2.bf16.msra.mxu0 %v1124
    %1751 = vmatprep.subr.bf16.mxu0 0
    %1752 = vmatpush2.bf16.msra.mxu0 %v1119
    %1753 = vmatprep.subr.bf16.mxu0 0
    %1754 = vmatpush2.bf16.msra.mxu0 %v1114
    %1755 = vmatprep.subr.bf16.mxu0 0
    %1756 = vmatpush2.bf16.msra.mxu0 %v1109
    %1757 = vmatprep.subr.bf16.mxu0 0
    %1758 = vmatpush2.bf16.msra.mxu0 %v1104
    %1759 = vmatprep.subr.bf16.mxu0 0
    %1760 = vmatpush2.bf16.msra.mxu0 %v1099
    %1761 = vmatprep.mubr.bf16.mxu0 %v61
    %1762 = vmatmul.mubr.bf16.gmra.mxu0 %v60
    %v1763 = vpop.f32.mrf.mxu0
    %v1764 = vadd.f32 %v1716, %v1763
    %v1765 = vpop.f32.mrf.mxu0
    %v1766 = vpop.f32.mrf.mxu0
    %v1767 = vadd.f32 %v1719, %v1766
    %v1768 = vpop.f32.mrf.mxu0
    %1769 = vmatprep.mubr.bf16.mxu0 %v66
    %1770 = vmatmul.mubr.bf16.gmra.mxu0 %v65
    %v1771 = vpop.f32.mrf.mxu0
    %v1772 = vadd.f32 %v1724, %v1771
    %v1773 = vpop.f32.mrf.mxu0
    %v1774 = vpop.f32.mrf.mxu0
    %v1775 = vpop.f32.mrf.mxu0
    %1776 = vdwg.mxu0
    %1777 = vmatprep.subr.bf16.mxu0 0
    %1778 = vmatpush1.bf16.msra.mxu0 %v1174
    %1779 = vmatprep.subr.bf16.mxu0 0
    %1780 = vmatpush1.bf16.msra.mxu0 %v1169
    %1781 = vmatprep.subr.bf16.mxu0 0
    %1782 = vmatpush1.bf16.msra.mxu0 %v1164
    %1783 = vmatprep.subr.bf16.mxu0 0
    %1784 = vmatpush1.bf16.msra.mxu0 %v1159
    %1785 = vmatprep.subr.bf16.mxu0 0
    %1786 = vmatpush1.bf16.msra.mxu0 %v1154
    %1787 = vmatprep.subr.bf16.mxu0 0
    %1788 = vmatpush1.bf16.msra.mxu0 %v1149
    %1789 = vmatprep.subr.bf16.mxu0 0
    %1790 = vmatpush1.bf16.msra.mxu0 %v1144
    %1791 = vmatprep.subr.bf16.mxu0 0
    %1792 = vmatpush1.bf16.msra.mxu0 %v1139
    %1793 = vmatprep.subr.bf16.mxu0 0
    %1794 = vmatpush2.bf16.msra.mxu0 0
    %1795 = vmatprep.subr.bf16.mxu0 0
    %1796 = vmatpush2.bf16.msra.mxu0 0
    %1797 = vmatprep.subr.bf16.mxu0 0
    %1798 = vmatpush2.bf16.msra.mxu0 0
    %1799 = vmatprep.subr.bf16.mxu0 0
    %1800 = vmatpush2.bf16.msra.mxu0 0
    %1801 = vmatprep.subr.bf16.mxu0 0
    %1802 = vmatpush2.bf16.msra.mxu0 0
    %1803 = vmatprep.subr.bf16.mxu0 0
    %1804 = vmatpush2.bf16.msra.mxu0 0
    %1805 = vmatprep.subr.bf16.mxu0 0
    %1806 = vmatpush2.bf16.msra.mxu0 0
    %1807 = vmatprep.subr.bf16.mxu0 0
    %1808 = vmatpush2.bf16.msra.mxu0 0
    %1809 = vmatprep.mubr.bf16.mxu0 0
    %1810 = vmatmul.mubr.bf16.gmra.mxu0 %v62
    %v1811 = vpop.f32.mrf.mxu0
    %v1812 = vadd.f32 %v1764, %v1811
    %v1813 = vpop.f32.mrf.mxu0
    %v1814 = vpop.f32.mrf.mxu0
    %v1815 = vadd.f32 %v1767, %v1814
    %v1816 = vpop.f32.mrf.mxu0
    %1817 = vmatprep.mubr.bf16.mxu0 0
    %1818 = vmatmul.mubr.bf16.gmra.mxu0 %v67
    %v1819 = vpop.f32.mrf.mxu0
    %v1820 = vadd.f32 %v1772, %v1819
    %v1821 = vpop.f32.mrf.mxu0
    %v1822 = vpop.f32.mrf.mxu0
    %v1823 = vpop.f32.mrf.mxu0
    %1824 = vdwg.mxu0
    %v1825 = vpack.c.bf16 %v1516, %v1512
    %v1826 = vpack.c.bf16 %v1518, %v1514
    %v1827 = vpack.c.bf16 %v1669, %v1665
    %v1828 = vpack.c.bf16 %v1671, %v1667
    %v1829 = vpack.c.bf16 %v1815, %v1812
    %v1830 = vpack.c.bf16 %v1522, %v1522
    %v1831 = vpack.c.bf16 %v1524, %v1524
    %v1832 = vpack.c.bf16 %v1675, %v1675
    %v1833 = vpack.c.bf16 %v1677, %v1677
    %v1834 = vpack.c.bf16 %v1820, %v1820
    %v1845 = vunpack.c.l.b16 %v1825
    %v1846 = vunpack.c.l.b16 %v1826
    %v1847 = vunpack.c.l.b16 %v1827
    %v1848 = vunpack.c.l.b16 %v1828
    %v1849 = vunpack.c.l.b16 %v1829
    %v1850 = vunpack.c.h.b16 %v1825
    %v1851 = vunpack.c.h.b16 %v1826
    %v1852 = vunpack.c.h.b16 %v1827
    %v1853 = vunpack.c.h.b16 %v1828
    %v1854 = vunpack.c.h.b16 %v1829
    %v1855 = vunpack.c.l.b16 %v1830
    %v1856 = vunpack.c.l.b16 %v1831
    %v1857 = vunpack.c.l.b16 %v1832
    %v1858 = vunpack.c.l.b16 %v1833
    %v1859 = vunpack.c.l.b16 %v1834
    %v1860 = vpack.c.b16 %v1846, %v1845
    %v1861 = vpack.c.b16 %v1848, %v1847
    %v1862 = vpack.c.b16 %v1849, %v1849
    %v1863 = vpack.c.b16 %v1851, %v1850
    %v1864 = vpack.c.b16 %v1853, %v1852
    %v1865 = vpack.c.b16 %v1854, %v1854
    %v1866 = vpack.c.b16 %v1856, %v1855
    %v1867 = vpack.c.b16 %v1858, %v1857
    %v1868 = vpack.c.b16 %v1859, %v1859
    %1878 = vst [vmem:[%s3] sm:$0xff] %v1860
    %1879 = vst [vmem:[%s3 + $0x8] sm:$0xff] %v1861
    %1880 = vst [vmem:[%s3 + $0x10] sm:$0xf] %v1862
    %1881 = vst [vmem:[%s3 + $0x14] sm:$0xff] %v1863
    %1882 = vst [vmem:[%s3 + $0x1c] sm:$0xff] %v1864
    %1883 = vst [vmem:[%s3 + $0x24] sm:$0xf] %v1865
    %1884 = vst [vmem:[%s3 + $0x28] sm:$0xff] %v1866
    %1885 = vst [vmem:[%s3 + $0x30] sm:$0xff] %v1867
    %1886 = vst [vmem:[%s3 + $0x38] sm:$0xf] %v1868
    // Predicated region
    $region22: #{model_forward.2} parent=1 // pred_check
      _
    $region23: #{model_forward.2} parent=1 // pred_check_branch
      %1888 = sbr.rel (0) target = $region25
    $region24: #{model_forward.2} parent=1 // pred_region
      _
    $region25: #{model_forward.2} parent=1 // pred_fallthru
      _
    // Predicated region
    $region26: #{model_forward.2} parent=1 // pred_check
      _
    $region27: #{model_forward.2} parent=1 // pred_check_branch
      %1890 = sbr.rel (0) target = $region29
    $region28: #{model_forward.2} parent=1 // pred_region
      _
    $region29: #{model_forward.2} parent=1 // pred_fallthru
      _
    %1891 = vsyncpa [#allocation3], 1
    %1892 = vsyncpa [#allocation5], 1

</llo_original>
